<compile_context>
chip_gen: v7x
topology: tpu7x:2x2x1
jax: 0.10.0
libtpu: 0.0.40
codegen_flags: <defaults>
</compile_context>

<pallas_src>
import functools

import jax
import jax.numpy as jnp
import numpy as np
from jax import lax
from jax.experimental import pallas as pl
from jax.experimental.pallas import tpu as pltpu


def _stacked_co_attention_kernel(q_ref, k_ref, qcol_ref, negk_ref, negkp_ref,
                                 wq_ref, bq_ref, wkv_ref, bkv_ref,
                                 wo_ref, bo_ref, ln_g_ref, ln_b_ref,
                                 wff_ref, bff_ref, out_ref, x_sc,
                                 *, num_heads, head_dim, num_layers):
    """One CoAttention layer for one batch element; grid = (batch, layer)."""
    H, hd = num_heads, head_dim
    l = pl.program_id(1)

    # Layer 0: load the input activation into the VMEM-resident carry.
    @pl.when(l == 0)
    def _():
        x_sc[...] = q_ref[0]

    x = x_sc[...]                              # (Lq, E) f32 running activation
    E = x.shape[-1]

    def mm(a, b):                              # (m,k)@(k,n) -> f32
        return lax.dot_general(a, b, (((1,), (0,)), ((), ())),
                               preferred_element_type=jnp.float32)

    # --- lane-dense input projections (full-width MXU: N=E and N=2E) -------
    Q = mm(x.astype(jnp.bfloat16), wq_ref[0]) + bq_ref[0]       # (Lq, E) f32, 1/sqrt(hd) folded
    KV = mm(k_ref[0], wkv_ref[0]) + bkv_ref[0]                  # (Lk, 2E) f32  (K cols then V cols)
    Qb = Q.astype(jnp.bfloat16)
    KVb = KV.astype(jnp.bfloat16)

    # Tiny per-batch mask rows (lane dense); additive mask rebuilt per head:
    #   mask(h,q,k) = qcol(q,h) * negk(h,k) + negkp(k)   in {0, -1e30, -2e30}
    qcol = qcol_ref[0]                         # (Lq, H)  0/1   (q-mask columns)
    negk = negk_ref[0]                         # (H, Lk)  0/-1e30
    negkp = negkp_ref[0]                       # (1, Lk)  0/-1e30

    att = []
    for h in range(H):                         # static unroll; per-head QK^T/PV is inherent to MHA
        lo = h * hd
        q_h = Qb[:, lo:lo + hd]                # (Lq, hd) bf16
        k_h = KVb[:, lo:lo + hd]               # (Lk, hd) bf16
        v_h = KVb[:, E + lo:E + lo + hd]       # (Lk, hd) bf16

        s = lax.dot_general(q_h, k_h, (((1,), (1,)), ((), ())),
                            preferred_element_type=jnp.float32)     # (Lq, Lk) f32
        s = s + (qcol[:, h:h + 1] * negk[h:h + 1, :] + negkp)

        m = jnp.max(s, axis=-1, keepdims=True)
        e = jnp.exp(s - m)
        denom = jnp.sum(e, axis=-1, keepdims=True)                  # (Lq, 1)

        a_h = lax.dot_general(e.astype(jnp.bfloat16), v_h, (((1,), (0,)), ((), ())),
                              preferred_element_type=jnp.float32)   # (Lq, hd) f32
        # Deferred softmax normalization: scale (Lq,hd) instead of (Lq,Lk).
        a_h = a_h * pl.reciprocal(denom, approx=True)
        att.append(a_h.astype(jnp.bfloat16))

    attn = jnp.concatenate(att, axis=-1)                            # (Lq, E) bf16, head-major

    # --- single out-projection (K=E) + residual + LayerNorm + FF + residual
    q_with_attn = mm(attn, wo_ref[0]) + bo_ref[0]                   # (Lq, E) f32
    xr = x + q_with_attn
    mu = jnp.mean(xr, axis=-1, keepdims=True)
    var = jnp.mean((xr - mu) ** 2, axis=-1, keepdims=True)
    y = (xr - mu) * lax.rsqrt(var + 1e-5) * ln_g_ref[0] + ln_b_ref[0]
    ff = mm(y.astype(jnp.bfloat16), wff_ref[0]) + bff_ref[0]
    x_new = ff + xr                              # dropout = identity (eval)

    x_sc[...] = x_new                            # carry to next layer

    @pl.when(l == num_layers - 1)
    def _():
        out_ref[0] = x_new


def prepare_params(params, num_heads):
    """Repack PyTorch-layout layer params into the streamed kernel layout.

    - weights transposed to (in, out) and cast to bf16 (lane-dense N=E / N=2E matmuls),
    - 1/sqrt(head_dim) folded into the q-projection weight + bias,
    - K and V projections fused along the output dim: (Kd, 2E),
    - all layers stacked on a leading layer axis (streamed one layer at a time).
    """
    H = num_heads
    E = params[0][0].shape[0]
    hd = E // H
    scale = 1.0 / float(np.sqrt(hd))

    wq_l, bq_l, wkv_l, bkv_l, wo_l, bo_l = [], [], [], [], [], []
    g_l, bt_l, wf_l, bf_l = [], [], [], []
    for (wq, bq, wk, bk, wv, bv, wo, bo, g, bt, wf, bf) in params:
        wq_l.append((wq * scale).T.astype(jnp.bfloat16))                       # (E, E)
        bq_l.append((bq * scale).reshape(1, E).astype(jnp.float32))            # (1, E)
        wkv_l.append(jnp.concatenate([wk.T, wv.T], axis=1).astype(jnp.bfloat16))  # (Kd, 2E)
        bkv_l.append(jnp.concatenate([bk, bv]).reshape(1, 2 * E).astype(jnp.float32))
        wo_l.append(wo.T.astype(jnp.bfloat16))                                 # (E, E)
        bo_l.append(bo.reshape(1, E).astype(jnp.float32))
        g_l.append(g.reshape(1, E).astype(jnp.float32))
        bt_l.append(bt.reshape(1, E).astype(jnp.float32))
        wf_l.append(wf.T.astype(jnp.bfloat16))                                 # (E, E)
        bf_l.append(bf.reshape(1, E).astype(jnp.float32))

    stk = lambda xs: jnp.stack(xs, axis=0)
    return (stk(wq_l), stk(bq_l), stk(wkv_l), stk(bkv_l), stk(wo_l),
            stk(bo_l), stk(g_l), stk(bt_l), stk(wf_l), stk(bf_l))


def stacked_co_attention(q, k, q_mask, k_mask, params, num_heads):
    """q: (Lq, B, E), k: (Lk, B, Kd), masks: (B, L) float 0/1 (1 = masked).

    `params` is a list of per-layer tuples in PyTorch layout:
      (q_proj_w (E,E), q_proj_b (E,), k_proj_w (E,Kd), k_proj_b (E,),
       v_proj_w (E,Kd), v_proj_b (E,), out_proj_w (E,E), out_proj_b (E,),
       ln_w (E,), ln_b (E,), ff_w (E,E), ff_b (E,)).
    Returns (Lq, B, E) float32.
    """
    Lq, B, E = q.shape
    Lk, _, Kd = k.shape
    H = num_heads
    assert E % H == 0
    hd = E // H
    n_layers = len(params)

    qb = jnp.transpose(q, (1, 0, 2)).astype(jnp.float32)     # (B, Lq, E)  residual path
    kb = jnp.transpose(k, (1, 0, 2)).astype(jnp.bfloat16)    # (B, Lk, Kd) MXU operand

    # Tiny lane-dense per-batch mask rows (effective per-(b,h) attn-mask batch index is
    # (b*H + h) % B -- torch.cat([qk_mask]*H, 0) vs. nn.MultiheadAttention's b*H+h layout).
    NEG = jnp.float32(-1e30)
    if q_mask is None or k_mask is None:
        qcolT = jnp.zeros((B, Lq, H), jnp.float32)
        negk = jnp.zeros((B, H, Lk), jnp.float32)
        negkp = jnp.zeros((B, 1, Lk), jnp.float32)
    else:
        idx = (jnp.arange(B)[:, None] * H + jnp.arange(H)[None, :]) % B   # (B, H)
        qm = (q_mask != 0).astype(jnp.float32)                            # (B, Lq)
        km = (k_mask != 0).astype(jnp.float32)                            # (B, Lk)
        # q-mask pre-transposed to (B, Lq, H) so the kernel gets (Lq,1) columns with a
        # plain lane slice (no in-kernel relayout); key rows stay lane-dense.
        qcolT = jnp.transpose(qm[idx], (0, 2, 1))                         # (B, Lq, H) 0/1
        negk = NEG * km[idx]                                              # (B, H, Lk)
        negkp = NEG * km[:, None, :]                                      # (B, 1, Lk)

    kernel_params = prepare_params(params, H)

    def batch_spec(a):      # block index follows the batch grid axis only
        return pl.BlockSpec((1,) + a.shape[1:], lambda b, l: (b, 0, 0))

    def layer_spec(a):      # block index follows the layer grid axis (weight streaming)
        return pl.BlockSpec((1,) + a.shape[1:], lambda b, l: (l, 0, 0))

    in_specs = ([batch_spec(a) for a in (qb, kb, qcolT, negk, negkp)]
                + [layer_spec(p) for p in kernel_params])

    # Advisory cost estimate for XLA's scheduler.
    flops = int(n_layers * B * (6 * Lq * E * E + 4 * Lk * Kd * E + 4 * Lq * Lk * E))
    transcendentals = int(n_layers * B * (H * Lq * Lk + H * Lq + Lq))
    nbytes = lambda a: int(a.size) * int(a.dtype.itemsize)
    bytes_accessed = int(sum(nbytes(a) for a in (qb, kb, qcolT, negk, negkp))
                         + sum(nbytes(p) for p in kernel_params)
                         + B * Lq * E * 4)

    out = pl.pallas_call(
        functools.partial(_stacked_co_attention_kernel,
                          num_heads=H, head_dim=hd, num_layers=n_layers),
        out_shape=jax.ShapeDtypeStruct((B, Lq, E), jnp.float32),
        grid=(B, n_layers),
        in_specs=in_specs,
        out_specs=pl.BlockSpec((1, Lq, E), lambda b, l: (b, 0, 0)),
        scratch_shapes=[pltpu.VMEM((Lq, E), jnp.float32)],   # activation carried across layers
        compiler_params=pltpu.CompilerParams(
            dimension_semantics=("parallel", "arbitrary"),
            vmem_limit_bytes=48 * 1024 * 1024),              # headroom on v7x's 64 MiB
        cost_estimate=pl.CostEstimate(flops=flops,
                                      transcendentals=transcendentals,
                                      bytes_accessed=bytes_accessed),
    )(qb, kb, qcolT, negk, negkp, *kernel_params)
    return jnp.transpose(out, (1, 0, 2))


def init_params(key, E, Kd, n_layers):
    """Deterministic synthetic parameters in PyTorch nn.Module layout."""
    params = []
    for _ in range(n_layers):
        key, *ks = jax.random.split(key, 13)
        wq = jax.random.normal(ks[0], (E, E), jnp.float32) * 0.1    # q_proj_weight (out, in)
        wk = jax.random.normal(ks[1], (E, Kd), jnp.float32) * 0.1   # k_proj_weight
        wv = jax.random.normal(ks[2], (E, Kd), jnp.float32) * 0.1   # v_proj_weight
        bq = jax.random.normal(ks[3], (E,), jnp.float32) * 0.05
        bk = jax.random.normal(ks[4], (E,), jnp.float32) * 0.05
        bv = jax.random.normal(ks[5], (E,), jnp.float32) * 0.05
        wo = jax.random.normal(ks[6], (E, E), jnp.float32) * 0.1    # out_proj.weight
        bo = jax.random.normal(ks[7], (E,), jnp.float32) * 0.05
        g = 1.0 + 0.1 * jax.random.normal(ks[8], (E,), jnp.float32)  # LayerNorm weight
        bt = 0.05 * jax.random.normal(ks[9], (E,), jnp.float32)      # LayerNorm bias
        wf = jax.random.normal(ks[10], (E, E), jnp.float32) * 0.1    # feed_forward.weight
        bf = jax.random.normal(ks[11], (E,), jnp.float32) * 0.05
        params.append((wq, bq, wk, bk, wv, bv, wo, bo, g, bt, wf, bf))
    return params


def build_additive_mask(q_mask, k_mask, num_heads, Lq, Lk, B):
    """Reproduces StackedCoAttention's mask construction exactly (reference only)."""
    if q_mask is None or k_mask is None:
        return jnp.zeros((B, num_heads, Lq, Lk), jnp.float32)
    qk = (q_mask[:, :, None] * k_mask[:, None, :]) != 0                    # (B, Lq, Lk)
    idx = (jnp.arange(B)[:, None] * num_heads + jnp.arange(num_heads)[None, :]) % B
    attn_mask = qk[idx]                                                    # (B, H, Lq, Lk)
    kpm = (k_mask != 0)[:, None, None, :]                                  # (B, 1, 1, Lk)
    masked = jnp.logical_or(attn_mask, kpm)
    return jnp.where(masked, jnp.float32(-1e30), jnp.float32(0.0))


def reference(qb, kb, q_mask, k_mask, params, H):
    """Pure-JAX f32 reference (batch-first) reproducing the PyTorch module math."""
    B, Lq, E = qb.shape
    Lk = kb.shape[1]
    hd = E // H
    add_mask = build_additive_mask(q_mask, k_mask, H, Lq, Lk, B)
    x = qb
    for (wq, bq, wk, bk, wv, bv, wo, bo, g, bt, wf, bf) in params:
        Q = (jnp.einsum('bqe,fe->bqf', x, wq, precision='highest') + bq) / np.sqrt(hd)
        K = jnp.einsum('bkc,fc->bkf', kb, wk, precision='highest') + bk
        V = jnp.einsum('bkc,fc->bkf', kb, wv, precision='highest') + bv
        Qh = Q.reshape(B, Lq, H, hd)
        Kh = K.reshape(B, Lk, H, hd)
        Vh = V.reshape(B, Lk, H, hd)
        s = jnp.einsum('bqhd,bkhd->bhqk', Qh, Kh, precision='highest') + add_mask
        p = jax.nn.softmax(s, axis=-1)
        a = jnp.einsum('bhqk,bkhd->bqhd', p, Vh, precision='highest').reshape(B, Lq, E)
        q_attn = jnp.einsum('bqe,fe->bqf', a, wo, precision='highest') + bo
        z = x + q_attn
        mu = z.mean(-1, keepdims=True)
        var = ((z - mu) ** 2).mean(-1, keepdims=True)
        y = (z - mu) / jnp.sqrt(var + 1e-5) * g + bt
        x = jnp.einsum('bqe,fe->bqf', y, wf, precision='highest') + bf + z
    return x


if __name__ == "__main__":
    B, Lq, Lk, E, Kd, H, n_layers = 2, 8, 16, 32, 48, 4, 2

    key = jax.random.PRNGKey(0)
    k_par, k_q, k_k, k_qm, k_km = jax.random.split(key, 5)

    q = jax.random.normal(k_q, (Lq, B, E), jnp.float32)
    kk = jax.random.normal(k_k, (Lk, B, Kd), jnp.float32)
    # masks are float 0/1; value 1 means "masked" (PyTorch bool-mask semantics).
    q_mask = (jax.random.uniform(k_qm, (B, Lq)) < 0.3).astype(jnp.float32)
    k_mask = (jax.random.uniform(k_km, (B, Lk)) < 0.3).astype(jnp.float32)
    k_mask = k_mask.at[:, 0].set(0.0)   # keep at least one un-masked key per batch

    params = init_params(k_par, E, Kd, n_layers)

    out = stacked_co_attention(q, kk, q_mask, k_mask, params, H)
    out = jax.block_until_ready(out)
    assert out.shape == (Lq, B, E)

    # Cross-check against a pure-JAX f32 reference (kernel uses bf16 MXU operands and an
    # approximate softmax reciprocal, hence the slightly relaxed tolerance).
    qb = jnp.transpose(q, (1, 0, 2))
    kb = jnp.transpose(kk, (1, 0, 2))
    ref = jnp.transpose(reference(qb, kb, q_mask, k_mask, params, H), (1, 0, 2))
    np.testing.assert_allclose(np.asarray(out), np.asarray(ref), rtol=3e-2, atol=3e-2)
    assert np.all(np.isfinite(np.asarray(out)))

    print("KERNEL_OK")
</pallas_src>

<mosaic_0001>
module attributes {stable_mosaic.version = 11 : i64} {
  func.func @_stacked_co_attention_kernel(%arg0: i32, %arg1: i32, %arg2: memref<1x8x32xf32, #tpu.memory_space<vmem>>, %arg3: memref<1x16x48xbf16, #tpu.memory_space<vmem>>, %arg4: memref<1x8x4xf32, #tpu.memory_space<vmem>>, %arg5: memref<1x4x16xf32, #tpu.memory_space<vmem>>, %arg6: memref<1x1x16xf32, #tpu.memory_space<vmem>>, %arg7: memref<1x32x32xbf16, #tpu.memory_space<vmem>>, %arg8: memref<1x1x32xf32, #tpu.memory_space<vmem>>, %arg9: memref<1x48x64xbf16, #tpu.memory_space<vmem>>, %arg10: memref<1x1x64xf32, #tpu.memory_space<vmem>>, %arg11: memref<1x32x32xbf16, #tpu.memory_space<vmem>>, %arg12: memref<1x1x32xf32, #tpu.memory_space<vmem>>, %arg13: memref<1x1x32xf32, #tpu.memory_space<vmem>>, %arg14: memref<1x1x32xf32, #tpu.memory_space<vmem>>, %arg15: memref<1x32x32xbf16, #tpu.memory_space<vmem>>, %arg16: memref<1x1x32xf32, #tpu.memory_space<vmem>>, %arg17: memref<1x8x32xf32, #tpu.memory_space<vmem>>, %arg18: memref<8x32xf32, #tpu.memory_space<vmem>>) attributes {dimension_semantics = [#tpu.dimension_semantics<parallel>, #tpu.dimension_semantics<arbitrary>], iteration_bounds = array<i64: 2, 2>, scalar_prefetch = 0 : i64, scratch_operands = 1 : i64, tpu.core_type = #tpu.core_type<tc>, window_params = [{transform_indices = @transform_0, window_bounds = array<i64: 1, 8, 32>}, {transform_indices = @transform_1, window_bounds = array<i64: 1, 16, 48>}, {transform_indices = @transform_2, window_bounds = array<i64: 1, 8, 4>}, {transform_indices = @transform_3, window_bounds = array<i64: 1, 4, 16>}, {transform_indices = @transform_4, window_bounds = array<i64: 1, 1, 16>}, {transform_indices = @transform_5, window_bounds = array<i64: 1, 32, 32>}, {transform_indices = @transform_6, window_bounds = array<i64: 1, 1, 32>}, {transform_indices = @transform_7, window_bounds = array<i64: 1, 48, 64>}, {transform_indices = @transform_8, window_bounds = array<i64: 1, 1, 64>}, {transform_indices = @transform_9, window_bounds = array<i64: 1, 32, 32>}, {transform_indices = @transform_10, window_bounds = array<i64: 1, 1, 32>}, {transform_indices = @transform_11, window_bounds = array<i64: 1, 1, 32>}, {transform_indices = @transform_12, window_bounds = array<i64: 1, 1, 32>}, {transform_indices = @transform_13, window_bounds = array<i64: 1, 32, 32>}, {transform_indices = @transform_14, window_bounds = array<i64: 1, 1, 32>}, {transform_indices = @transform_15, window_bounds = array<i64: 1, 8, 32>}]} {
    %c0_i32 = arith.constant 0 : i32
    %0 = arith.cmpi eq, %arg1, %c0_i32 : i32
    %1 = arith.extui %0 : i1 to i32
    %c0_i32_0 = arith.constant 0 : i32
    %2 = arith.cmpi ne, %1, %c0_i32_0 : i32
    scf.if %2 {
      %c0_71 = arith.constant 0 : index
      %c0_72 = arith.constant 0 : index
      %c0_73 = arith.constant 0 : index
      %177 = vector.load %arg2[%c0_71, %c0_72, %c0_73] : memref<1x8x32xf32, #tpu.memory_space<vmem>>, vector<1x8x32xf32>
      %178 = vector.shape_cast %177 : vector<1x8x32xf32> to vector<8x32xf32>
      %c0_74 = arith.constant 0 : index
      %c0_75 = arith.constant 0 : index
      %179 = vector.load %arg18[%c0_74, %c0_75] : memref<8x32xf32, #tpu.memory_space<vmem>>, vector<8x32xf32>
      tpu.vector_store %arg18[%c0_74, %c0_75], %178 {strides = array<i32>} : memref<8x32xf32, #tpu.memory_space<vmem>>, vector<8x32xf32>,
    } else {
    }
    %c0 = arith.constant 0 : index
    %c0_1 = arith.constant 0 : index
    %3 = vector.load %arg18[%c0, %c0_1] : memref<8x32xf32, #tpu.memory_space<vmem>>, vector<8x32xf32>
    %4 = arith.truncf %3 : vector<8x32xf32> to vector<8x32xbf16>
    %c0_2 = arith.constant 0 : index
    %c0_3 = arith.constant 0 : index
    %c0_4 = arith.constant 0 : index
    %5 = vector.load %arg7[%c0_2, %c0_3, %c0_4] : memref<1x32x32xbf16, #tpu.memory_space<vmem>>, vector<1x32x32xbf16>
    %6 = vector.shape_cast %5 : vector<1x32x32xbf16> to vector<32x32xbf16>
    %cst = arith.constant dense<0.000000e+00> : vector<8x32xf32>
    %7 = tpu.matmul %4, %6, %cst {dimension_numbers = #tpu.dot_dimension_numbers<[1], [0], [0], [1], [0, 0, 1, 1], [], []>} : vector<8x32xbf16>, vector<32x32xbf16>, vector<8x32xf32> -> vector<8x32xf32>
    %c0_5 = arith.constant 0 : index
    %c0_6 = arith.constant 0 : index
    %c0_7 = arith.constant 0 : index
    %8 = vector.load %arg8[%c0_5, %c0_6, %c0_7] : memref<1x1x32xf32, #tpu.memory_space<vmem>>, vector<1x1x32xf32>
    %9 = vector.shape_cast %8 : vector<1x1x32xf32> to vector<1x32xf32>
    %10 = vector.broadcast %9 : vector<1x32xf32> to vector<8x32xf32>
    %11 = arith.addf %7, %10 : vector<8x32xf32>
    %c0_8 = arith.constant 0 : index
    %c0_9 = arith.constant 0 : index
    %c0_10 = arith.constant 0 : index
    %12 = vector.load %arg3[%c0_8, %c0_9, %c0_10] : memref<1x16x48xbf16, #tpu.memory_space<vmem>>, vector<1x16x48xbf16>
    %13 = vector.shape_cast %12 : vector<1x16x48xbf16> to vector<16x48xbf16>
    %c0_11 = arith.constant 0 : index
    %c0_12 = arith.constant 0 : index
    %c0_13 = arith.constant 0 : index
    %14 = vector.load %arg9[%c0_11, %c0_12, %c0_13] : memref<1x48x64xbf16, #tpu.memory_space<vmem>>, vector<1x48x64xbf16>
    %15 = vector.shape_cast %14 : vector<1x48x64xbf16> to vector<48x64xbf16>
    %cst_14 = arith.constant dense<0.000000e+00> : vector<16x64xf32>
    %16 = tpu.matmul %13, %15, %cst_14 {dimension_numbers = #tpu.dot_dimension_numbers<[1], [0], [0], [1], [0, 0, 1, 1], [], []>} : vector<16x48xbf16>, vector<48x64xbf16>, vector<16x64xf32> -> vector<16x64xf32>
    %c0_15 = arith.constant 0 : index
    %c0_16 = arith.constant 0 : index
    %c0_17 = arith.constant 0 : index
    %17 = vector.load %arg10[%c0_15, %c0_16, %c0_17] : memref<1x1x64xf32, #tpu.memory_space<vmem>>, vector<1x1x64xf32>
    %18 = vector.shape_cast %17 : vector<1x1x64xf32> to vector<1x64xf32>
    %19 = vector.broadcast %18 : vector<1x64xf32> to vector<16x64xf32>
    %20 = arith.addf %16, %19 : vector<16x64xf32>
    %21 = arith.truncf %11 : vector<8x32xf32> to vector<8x32xbf16>
    %22 = arith.truncf %20 : vector<16x64xf32> to vector<16x64xbf16>
    %c0_18 = arith.constant 0 : index
    %c0_19 = arith.constant 0 : index
    %c0_20 = arith.constant 0 : index
    %23 = vector.load %arg4[%c0_18, %c0_19, %c0_20] : memref<1x8x4xf32, #tpu.memory_space<vmem>>, vector<1x8x4xf32>
    %24 = vector.shape_cast %23 : vector<1x8x4xf32> to vector<8x4xf32>
    %c0_21 = arith.constant 0 : index
    %c0_22 = arith.constant 0 : index
    %c0_23 = arith.constant 0 : index
    %25 = vector.load %arg5[%c0_21, %c0_22, %c0_23] : memref<1x4x16xf32, #tpu.memory_space<vmem>>, vector<1x4x16xf32>
    %26 = vector.shape_cast %25 : vector<1x4x16xf32> to vector<4x16xf32>
    %c0_24 = arith.constant 0 : index
    %c0_25 = arith.constant 0 : index
    %c0_26 = arith.constant 0 : index
    %27 = vector.load %arg6[%c0_24, %c0_25, %c0_26] : memref<1x1x16xf32, #tpu.memory_space<vmem>>, vector<1x1x16xf32>
    %28 = vector.shape_cast %27 : vector<1x1x16xf32> to vector<1x16xf32>
    %29 = vector.extract_strided_slice %21 {offsets = [0, 0], sizes = [8, 8], strides = [1, 1]} : vector<8x32xbf16> to vector<8x8xbf16>
    %30 = vector.extract_strided_slice %22 {offsets = [0, 0], sizes = [16, 8], strides = [1, 1]} : vector<16x64xbf16> to vector<16x8xbf16>
    %31 = vector.extract_strided_slice %22 {offsets = [0, 32], sizes = [16, 8], strides = [1, 1]} : vector<16x64xbf16> to vector<16x8xbf16>
    %cst_27 = arith.constant dense<0.000000e+00> : vector<8x16xf32>
    %32 = tpu.matmul %29, %30, %cst_27 {dimension_numbers = #tpu.dot_dimension_numbers<[1], [1], [0], [0], [0, 0, 1, 0], [], []>} : vector<8x8xbf16>, vector<16x8xbf16>, vector<8x16xf32> -> vector<8x16xf32>
    %33 = vector.extract_strided_slice %24 {offsets = [0, 0], sizes = [8, 1], strides = [1, 1]} : vector<8x4xf32> to vector<8x1xf32>
    %34 = vector.extract_strided_slice %26 {offsets = [0, 0], sizes = [1, 16], strides = [1, 1]} : vector<4x16xf32> to vector<1x16xf32>
    %35 = vector.broadcast %33 : vector<8x1xf32> to vector<8x16xf32>
    %36 = vector.broadcast %34 : vector<1x16xf32> to vector<8x16xf32>
    %37 = arith.mulf %35, %36 : vector<8x16xf32>
    %38 = vector.broadcast %28 : vector<1x16xf32> to vector<8x16xf32>
    %39 = arith.addf %37, %38 : vector<8x16xf32>
    %40 = arith.addf %32, %39 : vector<8x16xf32>
    %cst_28 = arith.constant dense<0xFF800000> : vector<8xf32>
    %41 = vector.multi_reduction <maximumf>, %40, %cst_28 [1] : vector<8x16xf32> to vector<8xf32>
    %42 = vector.shape_cast %41 : vector<8xf32> to vector<8x1xf32>
    %43 = vector.broadcast %42 : vector<8x1xf32> to vector<8x16xf32>
    %44 = arith.subf %40, %43 : vector<8x16xf32>
    %45 = math.exp %44 : vector<8x16xf32>
    %cst_29 = arith.constant dense<0.000000e+00> : vector<8xf32>
    %46 = vector.multi_reduction <add>, %45, %cst_29 [1] : vector<8x16xf32> to vector<8xf32>
    %47 = vector.shape_cast %46 : vector<8xf32> to vector<8x1xf32>
    %48 = arith.truncf %45 : vector<8x16xf32> to vector<8x16xbf16>
    %cst_30 = arith.constant dense<0.000000e+00> : vector<8x8xf32>
    %49 = tpu.matmul %48, %31, %cst_30 {dimension_numbers = #tpu.dot_dimension_numbers<[1], [0], [0], [1], [0, 0, 1, 1], [], []>} : vector<8x16xbf16>, vector<16x8xbf16>, vector<8x8xf32> -> vector<8x8xf32>
    %50 = tpu.reciprocal %47 {approx = true} : vector<8x1xf32> -> vector<8x1xf32>
    %51 = vector.broadcast %50 : vector<8x1xf32> to vector<8x8xf32>
    %52 = arith.mulf %49, %51 : vector<8x8xf32>
    %53 = arith.truncf %52 : vector<8x8xf32> to vector<8x8xbf16>
    %54 = vector.extract_strided_slice %21 {offsets = [0, 8], sizes = [8, 8], strides = [1, 1]} : vector<8x32xbf16> to vector<8x8xbf16>
    %55 = vector.extract_strided_slice %22 {offsets = [0, 8], sizes = [16, 8], strides = [1, 1]} : vector<16x64xbf16> to vector<16x8xbf16>
    %56 = vector.extract_strided_slice %22 {offsets = [0, 40], sizes = [16, 8], strides = [1, 1]} : vector<16x64xbf16> to vector<16x8xbf16>
    %cst_31 = arith.constant dense<0.000000e+00> : vector<8x16xf32>
    %57 = tpu.matmul %54, %55, %cst_31 {dimension_numbers = #tpu.dot_dimension_numbers<[1], [1], [0], [0], [0, 0, 1, 0], [], []>} : vector<8x8xbf16>, vector<16x8xbf16>, vector<8x16xf32> -> vector<8x16xf32>
    %58 = vector.extract_strided_slice %24 {offsets = [0, 1], sizes = [8, 1], strides = [1, 1]} : vector<8x4xf32> to vector<8x1xf32>
    %59 = vector.extract_strided_slice %26 {offsets = [1, 0], sizes = [1, 16], strides = [1, 1]} : vector<4x16xf32> to vector<1x16xf32>
    %60 = vector.broadcast %58 : vector<8x1xf32> to vector<8x16xf32>
    %61 = vector.broadcast %59 : vector<1x16xf32> to vector<8x16xf32>
    %62 = arith.mulf %60, %61 : vector<8x16xf32>
    %63 = vector.broadcast %28 : vector<1x16xf32> to vector<8x16xf32>
    %64 = arith.addf %62, %63 : vector<8x16xf32>
    %65 = arith.addf %57, %64 : vector<8x16xf32>
    %cst_32 = arith.constant dense<0xFF800000> : vector<8xf32>
    %66 = vector.multi_reduction <maximumf>, %65, %cst_32 [1] : vector<8x16xf32> to vector<8xf32>
    %67 = vector.shape_cast %66 : vector<8xf32> to vector<8x1xf32>
    %68 = vector.broadcast %67 : vector<8x1xf32> to vector<8x16xf32>
    %69 = arith.subf %65, %68 : vector<8x16xf32>
    %70 = math.exp %69 : vector<8x16xf32>
    %cst_33 = arith.constant dense<0.000000e+00> : vector<8xf32>
    %71 = vector.multi_reduction <add>, %70, %cst_33 [1] : vector<8x16xf32> to vector<8xf32>
    %72 = vector.shape_cast %71 : vector<8xf32> to vector<8x1xf32>
    %73 = arith.truncf %70 : vector<8x16xf32> to vector<8x16xbf16>
    %cst_34 = arith.constant dense<0.000000e+00> : vector<8x8xf32>
    %74 = tpu.matmul %73, %56, %cst_34 {dimension_numbers = #tpu.dot_dimension_numbers<[1], [0], [0], [1], [0, 0, 1, 1], [], []>} : vector<8x16xbf16>, vector<16x8xbf16>, vector<8x8xf32> -> vector<8x8xf32>
    %75 = tpu.reciprocal %72 {approx = true} : vector<8x1xf32> -> vector<8x1xf32>
    %76 = vector.broadcast %75 : vector<8x1xf32> to vector<8x8xf32>
    %77 = arith.mulf %74, %76 : vector<8x8xf32>
    %78 = arith.truncf %77 : vector<8x8xf32> to vector<8x8xbf16>
    %79 = vector.extract_strided_slice %21 {offsets = [0, 16], sizes = [8, 8], strides = [1, 1]} : vector<8x32xbf16> to vector<8x8xbf16>
    %80 = vector.extract_strided_slice %22 {offsets = [0, 16], sizes = [16, 8], strides = [1, 1]} : vector<16x64xbf16> to vector<16x8xbf16>
    %81 = vector.extract_strided_slice %22 {offsets = [0, 48], sizes = [16, 8], strides = [1, 1]} : vector<16x64xbf16> to vector<16x8xbf16>
    %cst_35 = arith.constant dense<0.000000e+00> : vector<8x16xf32>
    %82 = tpu.matmul %79, %80, %cst_35 {dimension_numbers = #tpu.dot_dimension_numbers<[1], [1], [0], [0], [0, 0, 1, 0], [], []>} : vector<8x8xbf16>, vector<16x8xbf16>, vector<8x16xf32> -> vector<8x16xf32>
    %83 = vector.extract_strided_slice %24 {offsets = [0, 2], sizes = [8, 1], strides = [1, 1]} : vector<8x4xf32> to vector<8x1xf32>
    %84 = vector.extract_strided_slice %26 {offsets = [2, 0], sizes = [1, 16], strides = [1, 1]} : vector<4x16xf32> to vector<1x16xf32>
    %85 = vector.broadcast %83 : vector<8x1xf32> to vector<8x16xf32>
    %86 = vector.broadcast %84 : vector<1x16xf32> to vector<8x16xf32>
    %87 = arith.mulf %85, %86 : vector<8x16xf32>
    %88 = vector.broadcast %28 : vector<1x16xf32> to vector<8x16xf32>
    %89 = arith.addf %87, %88 : vector<8x16xf32>
    %90 = arith.addf %82, %89 : vector<8x16xf32>
    %cst_36 = arith.constant dense<0xFF800000> : vector<8xf32>
    %91 = vector.multi_reduction <maximumf>, %90, %cst_36 [1] : vector<8x16xf32> to vector<8xf32>
    %92 = vector.shape_cast %91 : vector<8xf32> to vector<8x1xf32>
    %93 = vector.broadcast %92 : vector<8x1xf32> to vector<8x16xf32>
    %94 = arith.subf %90, %93 : vector<8x16xf32>
    %95 = math.exp %94 : vector<8x16xf32>
    %cst_37 = arith.constant dense<0.000000e+00> : vector<8xf32>
    %96 = vector.multi_reduction <add>, %95, %cst_37 [1] : vector<8x16xf32> to vector<8xf32>
    %97 = vector.shape_cast %96 : vector<8xf32> to vector<8x1xf32>
    %98 = arith.truncf %95 : vector<8x16xf32> to vector<8x16xbf16>
    %cst_38 = arith.constant dense<0.000000e+00> : vector<8x8xf32>
    %99 = tpu.matmul %98, %81, %cst_38 {dimension_numbers = #tpu.dot_dimension_numbers<[1], [0], [0], [1], [0, 0, 1, 1], [], []>} : vector<8x16xbf16>, vector<16x8xbf16>, vector<8x8xf32> -> vector<8x8xf32>
    %100 = tpu.reciprocal %97 {approx = true} : vector<8x1xf32> -> vector<8x1xf32>
    %101 = vector.broadcast %100 : vector<8x1xf32> to vector<8x8xf32>
    %102 = arith.mulf %99, %101 : vector<8x8xf32>
    %103 = arith.truncf %102 : vector<8x8xf32> to vector<8x8xbf16>
    %104 = vector.extract_strided_slice %21 {offsets = [0, 24], sizes = [8, 8], strides = [1, 1]} : vector<8x32xbf16> to vector<8x8xbf16>
    %105 = vector.extract_strided_slice %22 {offsets = [0, 24], sizes = [16, 8], strides = [1, 1]} : vector<16x64xbf16> to vector<16x8xbf16>
    %106 = vector.extract_strided_slice %22 {offsets = [0, 56], sizes = [16, 8], strides = [1, 1]} : vector<16x64xbf16> to vector<16x8xbf16>
    %cst_39 = arith.constant dense<0.000000e+00> : vector<8x16xf32>
    %107 = tpu.matmul %104, %105, %cst_39 {dimension_numbers = #tpu.dot_dimension_numbers<[1], [1], [0], [0], [0, 0, 1, 0], [], []>} : vector<8x8xbf16>, vector<16x8xbf16>, vector<8x16xf32> -> vector<8x16xf32>
    %108 = vector.extract_strided_slice %24 {offsets = [0, 3], sizes = [8, 1], strides = [1, 1]} : vector<8x4xf32> to vector<8x1xf32>
    %109 = vector.extract_strided_slice %26 {offsets = [3, 0], sizes = [1, 16], strides = [1, 1]} : vector<4x16xf32> to vector<1x16xf32>
    %110 = vector.broadcast %108 : vector<8x1xf32> to vector<8x16xf32>
    %111 = vector.broadcast %109 : vector<1x16xf32> to vector<8x16xf32>
    %112 = arith.mulf %110, %111 : vector<8x16xf32>
    %113 = vector.broadcast %28 : vector<1x16xf32> to vector<8x16xf32>
    %114 = arith.addf %112, %113 : vector<8x16xf32>
    %115 = arith.addf %107, %114 : vector<8x16xf32>
    %cst_40 = arith.constant dense<0xFF800000> : vector<8xf32>
    %116 = vector.multi_reduction <maximumf>, %115, %cst_40 [1] : vector<8x16xf32> to vector<8xf32>
    %117 = vector.shape_cast %116 : vector<8xf32> to vector<8x1xf32>
    %118 = vector.broadcast %117 : vector<8x1xf32> to vector<8x16xf32>
    %119 = arith.subf %115, %118 : vector<8x16xf32>
    %120 = math.exp %119 : vector<8x16xf32>
    %cst_41 = arith.constant dense<0.000000e+00> : vector<8xf32>
    %121 = vector.multi_reduction <add>, %120, %cst_41 [1] : vector<8x16xf32> to vector<8xf32>
    %122 = vector.shape_cast %121 : vector<8xf32> to vector<8x1xf32>
    %123 = arith.truncf %120 : vector<8x16xf32> to vector<8x16xbf16>
    %cst_42 = arith.constant dense<0.000000e+00> : vector<8x8xf32>
    %124 = tpu.matmul %123, %106, %cst_42 {dimension_numbers = #tpu.dot_dimension_numbers<[1], [0], [0], [1], [0, 0, 1, 1], [], []>} : vector<8x16xbf16>, vector<16x8xbf16>, vector<8x8xf32> -> vector<8x8xf32>
    %125 = tpu.reciprocal %122 {approx = true} : vector<8x1xf32> -> vector<8x1xf32>
    %126 = vector.broadcast %125 : vector<8x1xf32> to vector<8x8xf32>
    %127 = arith.mulf %124, %126 : vector<8x8xf32>
    %128 = arith.truncf %127 : vector<8x8xf32> to vector<8x8xbf16>
    %129 = tpu.concatenate %53, %78, %103, %128 in 1 : vector<8x8xbf16>, vector<8x8xbf16>, vector<8x8xbf16>, vector<8x8xbf16> -> vector<8x32xbf16>
    %c0_43 = arith.constant 0 : index
    %c0_44 = arith.constant 0 : index
    %c0_45 = arith.constant 0 : index
    %130 = vector.load %arg11[%c0_43, %c0_44, %c0_45] : memref<1x32x32xbf16, #tpu.memory_space<vmem>>, vector<1x32x32xbf16>
    %131 = vector.shape_cast %130 : vector<1x32x32xbf16> to vector<32x32xbf16>
    %cst_46 = arith.constant dense<0.000000e+00> : vector<8x32xf32>
    %132 = tpu.matmul %129, %131, %cst_46 {dimension_numbers = #tpu.dot_dimension_numbers<[1], [0], [0], [1], [0, 0, 1, 1], [], []>} : vector<8x32xbf16>, vector<32x32xbf16>, vector<8x32xf32> -> vector<8x32xf32>
    %c0_47 = arith.constant 0 : index
    %c0_48 = arith.constant 0 : index
    %c0_49 = arith.constant 0 : index
    %133 = vector.load %arg12[%c0_47, %c0_48, %c0_49] : memref<1x1x32xf32, #tpu.memory_space<vmem>>, vector<1x1x32xf32>
    %134 = vector.shape_cast %133 : vector<1x1x32xf32> to vector<1x32xf32>
    %135 = vector.broadcast %134 : vector<1x32xf32> to vector<8x32xf32>
    %136 = arith.addf %132, %135 : vector<8x32xf32>
    %137 = arith.addf %3, %136 : vector<8x32xf32>
    %cst_50 = arith.constant dense<0.000000e+00> : vector<8xf32>
    %138 = vector.multi_reduction <add>, %137, %cst_50 [1] : vector<8x32xf32> to vector<8xf32>
    %139 = vector.shape_cast %138 : vector<8xf32> to vector<8x1xf32>
    %cst_51 = arith.constant 3.200000e+01 : f32
    %140 = vector.broadcast %cst_51 : f32 to vector<8x1xf32>
    %141 = arith.divf %139, %140 : vector<8x1xf32>
    %142 = vector.broadcast %141 : vector<8x1xf32> to vector<8x32xf32>
    %143 = arith.subf %137, %142 : vector<8x32xf32>
    %144 = arith.mulf %143, %143 : vector<8x32xf32>
    %cst_52 = arith.constant dense<0.000000e+00> : vector<8xf32>
    %145 = vector.multi_reduction <add>, %144, %cst_52 [1] : vector<8x32xf32> to vector<8xf32>
    %146 = vector.shape_cast %145 : vector<8xf32> to vector<8x1xf32>
    %cst_53 = arith.constant 3.200000e+01 : f32
    %147 = vector.broadcast %cst_53 : f32 to vector<8x1xf32>
    %148 = arith.divf %146, %147 : vector<8x1xf32>
    %149 = vector.broadcast %141 : vector<8x1xf32> to vector<8x32xf32>
    %150 = arith.subf %137, %149 : vector<8x32xf32>
    %cst_54 = arith.constant 9.99999974E-6 : f32
    %151 = vector.broadcast %cst_54 : f32 to vector<8x1xf32>
    %152 = arith.addf %148, %151 : vector<8x1xf32>
    %153 = math.rsqrt %152 : vector<8x1xf32>
    %154 = vector.broadcast %153 : vector<8x1xf32> to vector<8x32xf32>
    %155 = arith.mulf %150, %154 : vector<8x32xf32>
    %c0_55 = arith.constant 0 : index
    %c0_56 = arith.constant 0 : index
    %c0_57 = arith.constant 0 : index
    %156 = vector.load %arg13[%c0_55, %c0_56, %c0_57] : memref<1x1x32xf32, #tpu.memory_space<vmem>>, vector<1x1x32xf32>
    %157 = vector.shape_cast %156 : vector<1x1x32xf32> to vector<1x32xf32>
    %158 = vector.broadcast %157 : vector<1x32xf32> to vector<8x32xf32>
    %159 = arith.mulf %155, %158 : vector<8x32xf32>
    %c0_58 = arith.constant 0 : index
    %c0_59 = arith.constant 0 : index
    %c0_60 = arith.constant 0 : index
    %160 = vector.load %arg14[%c0_58, %c0_59, %c0_60] : memref<1x1x32xf32, #tpu.memory_space<vmem>>, vector<1x1x32xf32>
    %161 = vector.shape_cast %160 : vector<1x1x32xf32> to vector<1x32xf32>
    %162 = vector.broadcast %161 : vector<1x32xf32> to vector<8x32xf32>
    %163 = arith.addf %159, %162 : vector<8x32xf32>
    %164 = arith.truncf %163 : vector<8x32xf32> to vector<8x32xbf16>
    %c0_61 = arith.constant 0 : index
    %c0_62 = arith.constant 0 : index
    %c0_63 = arith.constant 0 : index
    %165 = vector.load %arg15[%c0_61, %c0_62, %c0_63] : memref<1x32x32xbf16, #tpu.memory_space<vmem>>, vector<1x32x32xbf16>
    %166 = vector.shape_cast %165 : vector<1x32x32xbf16> to vector<32x32xbf16>
    %cst_64 = arith.constant dense<0.000000e+00> : vector<8x32xf32>
    %167 = tpu.matmul %164, %166, %cst_64 {dimension_numbers = #tpu.dot_dimension_numbers<[1], [0], [0], [1], [0, 0, 1, 1], [], []>} : vector<8x32xbf16>, vector<32x32xbf16>, vector<8x32xf32> -> vector<8x32xf32>
    %c0_65 = arith.constant 0 : index
    %c0_66 = arith.constant 0 : index
    %c0_67 = arith.constant 0 : index
    %168 = vector.load %arg16[%c0_65, %c0_66, %c0_67] : memref<1x1x32xf32, #tpu.memory_space<vmem>>, vector<1x1x32xf32>
    %169 = vector.shape_cast %168 : vector<1x1x32xf32> to vector<1x32xf32>
    %170 = vector.broadcast %169 : vector<1x32xf32> to vector<8x32xf32>
    %171 = arith.addf %167, %170 : vector<8x32xf32>
    %172 = arith.addf %171, %137 : vector<8x32xf32>
    %c0_68 = arith.constant 0 : index
    %c0_69 = arith.constant 0 : index
    %173 = vector.load %arg18[%c0_68, %c0_69] : memref<8x32xf32, #tpu.memory_space<vmem>>, vector<8x32xf32>
    tpu.vector_store %arg18[%c0_68, %c0_69], %172 {strides = array<i32>} : memref<8x32xf32, #tpu.memory_space<vmem>>, vector<8x32xf32>,
    %c1_i32 = arith.constant 1 : i32
    %174 = arith.cmpi eq, %arg1, %c1_i32 : i32
    %175 = arith.extui %174 : i1 to i32
    %c0_i32_70 = arith.constant 0 : i32
    %176 = arith.cmpi ne, %175, %c0_i32_70 : i32
    scf.if %176 {
      %c0_71 = arith.constant 0 : index
      %c0_72 = arith.constant 0 : index
      %c0_73 = arith.constant 0 : index
      %177 = vector.load %arg17[%c0_71, %c0_72, %c0_73] : memref<1x8x32xf32, #tpu.memory_space<vmem>>, vector<1x8x32xf32>
      %178 = vector.shape_cast %177 : vector<1x8x32xf32> to vector<8x32xf32>
      %179 = vector.shape_cast %172 : vector<8x32xf32> to vector<1x8x32xf32>
      tpu.vector_store %arg17[%c0_71, %c0_72, %c0_73], %179 {strides = array<i32>} : memref<1x8x32xf32, #tpu.memory_space<vmem>>, vector<1x8x32xf32>,
    } else {
    }
    return
  }
  func.func @transform_0(%arg0: i32, %arg1: i32) -> (i32, i32, i32) {
    %c0_i32 = arith.constant 0 : i32
    %c0_i32_0 = arith.constant 0 : i32
    %c0_i32_1 = arith.constant 0 : i32
    return %arg0, %c0_i32, %c0_i32_0 : i32, i32, i32
  }
  func.func @transform_1(%arg0: i32, %arg1: i32) -> (i32, i32, i32) {
    %c0_i32 = arith.constant 0 : i32
    %c0_i32_0 = arith.constant 0 : i32
    %c0_i32_1 = arith.constant 0 : i32
    return %arg0, %c0_i32, %c0_i32_0 : i32, i32, i32
  }
  func.func @transform_2(%arg0: i32, %arg1: i32) -> (i32, i32, i32) {
    %c0_i32 = arith.constant 0 : i32
    %c0_i32_0 = arith.constant 0 : i32
    %c0_i32_1 = arith.constant 0 : i32
    return %arg0, %c0_i32, %c0_i32_0 : i32, i32, i32
  }
  func.func @transform_3(%arg0: i32, %arg1: i32) -> (i32, i32, i32) {
    %c0_i32 = arith.constant 0 : i32
    %c0_i32_0 = arith.constant 0 : i32
    %c0_i32_1 = arith.constant 0 : i32
    return %arg0, %c0_i32, %c0_i32_0 : i32, i32, i32
  }
  func.func @transform_4(%arg0: i32, %arg1: i32) -> (i32, i32, i32) {
    %c0_i32 = arith.constant 0 : i32
    %c0_i32_0 = arith.constant 0 : i32
    %c0_i32_1 = arith.constant 0 : i32
    return %arg0, %c0_i32, %c0_i32_0 : i32, i32, i32
  }
  func.func @transform_5(%arg0: i32, %arg1: i32) -> (i32, i32, i32) {
    %c0_i32 = arith.constant 0 : i32
    %c0_i32_0 = arith.constant 0 : i32
    %c0_i32_1 = arith.constant 0 : i32
    return %arg1, %c0_i32, %c0_i32_0 : i32, i32, i32
  }
  func.func @transform_6(%arg0: i32, %arg1: i32) -> (i32, i32, i32) {
    %c0_i32 = arith.constant 0 : i32
    %c0_i32_0 = arith.constant 0 : i32
    %c0_i32_1 = arith.constant 0 : i32
    return %arg1, %c0_i32, %c0_i32_0 : i32, i32, i32
  }
  func.func @transform_7(%arg0: i32, %arg1: i32) -> (i32, i32, i32) {
    %c0_i32 = arith.constant 0 : i32
    %c0_i32_0 = arith.constant 0 : i32
    %c0_i32_1 = arith.constant 0 : i32
    return %arg1, %c0_i32, %c0_i32_0 : i32, i32, i32
  }
  func.func @transform_8(%arg0: i32, %arg1: i32) -> (i32, i32, i32) {
    %c0_i32 = arith.constant 0 : i32
    %c0_i32_0 = arith.constant 0 : i32
    %c0_i32_1 = arith.constant 0 : i32
    return %arg1, %c0_i32, %c0_i32_0 : i32, i32, i32
  }
  func.func @transform_9(%arg0: i32, %arg1: i32) -> (i32, i32, i32) {
    %c0_i32 = arith.constant 0 : i32
    %c0_i32_0 = arith.constant 0 : i32
    %c0_i32_1 = arith.constant 0 : i32
    return %arg1, %c0_i32, %c0_i32_0 : i32, i32, i32
  }
  func.func @transform_10(%arg0: i32, %arg1: i32) -> (i32, i32, i32) {
    %c0_i32 = arith.constant 0 : i32
    %c0_i32_0 = arith.constant 0 : i32
    %c0_i32_1 = arith.constant 0 : i32
    return %arg1, %c0_i32, %c0_i32_0 : i32, i32, i32
  }
  func.func @transform_11(%arg0: i32, %arg1: i32) -> (i32, i32, i32) {
    %c0_i32 = arith.constant 0 : i32
    %c0_i32_0 = arith.constant 0 : i32
    %c0_i32_1 = arith.constant 0 : i32
    return %arg1, %c0_i32, %c0_i32_0 : i32, i32, i32
  }
  func.func @transform_12(%arg0: i32, %arg1: i32) -> (i32, i32, i32) {
    %c0_i32 = arith.constant 0 : i32
    %c0_i32_0 = arith.constant 0 : i32
    %c0_i32_1 = arith.constant 0 : i32
    return %arg1, %c0_i32, %c0_i32_0 : i32, i32, i32
  }
  func.func @transform_13(%arg0: i32, %arg1: i32) -> (i32, i32, i32) {
    %c0_i32 = arith.constant 0 : i32
    %c0_i32_0 = arith.constant 0 : i32
    %c0_i32_1 = arith.constant 0 : i32
    return %arg1, %c0_i32, %c0_i32_0 : i32, i32, i32
  }
  func.func @transform_14(%arg0: i32, %arg1: i32) -> (i32, i32, i32) {
    %c0_i32 = arith.constant 0 : i32
    %c0_i32_0 = arith.constant 0 : i32
    %c0_i32_1 = arith.constant 0 : i32
    return %arg1, %c0_i32, %c0_i32_0 : i32, i32, i32
  }
  func.func @transform_15(%arg0: i32, %arg1: i32) -> (i32, i32, i32) {
    %c0_i32 = arith.constant 0 : i32
    %c0_i32_0 = arith.constant 0 : i32
    %c0_i32_1 = arith.constant 0 : i32
    return %arg0, %c0_i32, %c0_i32_0 : i32, i32, i32
  }
}

</mosaic_0001>

<llo_original>
// kernel: tpu_custom_call.1
$region0: #{tpu_custom_call.1}
  #allocation0 [shape = 'u32[]', space=smem, size = 0x4, offset = 0x4, fixed_abs, tag = 'smem constant byte address 0x4 - core index']
  #allocation1 [shape = 'u32[144,128]{1,0:T(1,128)}', space=vmem, size = 0x12000, scoped, tag = 'internal scratch']
  #allocation2 [shape = 'f32[8,32]{1,0:T(8,128)}', space=vmem, size = 0x1000, scoped, tag = 'scratch operand']
  %s0 = inlined_call_operand.hbm [shape: f32[2,8,32], index: 0, kind: input, shape index: {}]
  %s1 = inlined_call_operand.hbm [shape: bf16[2,16,48], index: 1, kind: input, shape index: {}]
  %s2 = inlined_call_operand.vmem [shape: f32[2,8,4], index: 2, kind: input, shape index: {}]
  %s3 = inlined_call_operand.hbm [shape: f32[2,4,16], index: 3, kind: input, shape index: {}]
  %s4 = inlined_call_operand.vmem [shape: f32[2,1,16], index: 4, kind: input, shape index: {}]
  %s5 = inlined_call_operand.hbm [shape: bf16[2,32,32], index: 5, kind: input, shape index: {}]
  %s6 = inlined_call_operand.hbm [shape: f32[2,1,32], index: 6, kind: input, shape index: {}]
  %s7 = inlined_call_operand.vmem [shape: bf16[2,48,64], index: 7, kind: input, shape index: {}]
  %s8 = inlined_call_operand.vmem [shape: f32[2,1,64], index: 8, kind: input, shape index: {}]
  %s9 = inlined_call_operand.hbm [shape: bf16[2,32,32], index: 9, kind: input, shape index: {}]
  %s10 = inlined_call_operand.vmem [shape: f32[2,1,32], index: 10, kind: input, shape index: {}]
  %s11 = inlined_call_operand.vmem [shape: f32[2,1,32], index: 11, kind: input, shape index: {}]
  %s12 = inlined_call_operand.vmem [shape: f32[2,1,32], index: 12, kind: input, shape index: {}]
  %s13 = inlined_call_operand.hbm [shape: bf16[2,32,32], index: 13, kind: input, shape index: {}]
  %s14 = inlined_call_operand.vmem [shape: f32[2,1,32], index: 14, kind: input, shape index: {}]
  %s15 = inlined_call_operand.hbm [shape: f32[2,8,32], index: 15, kind: output, shape index: {}]
  %s16 = sld [smem:[#allocation0]]
  $region129: #{tpu_custom_call.1} parent=0
    _
  %s18 = ssub.s32 1, %s16
  %s19 = scalar_select 0, %s18, %s16
  $region1: #{tpu_custom_call.1} parent=0
    #allocation3 [shape = 'u8[8192]{0}', space=vmem, size = 0x2000, scoped, tag = 'input window, operand 0']
    #allocation4 [shape = 's32[2]{0}', space=sflag, size = 0x8, scoped, tag = 'scoped memory for tpu_custom_call.1']
    #allocation5 [shape = 's32[2]{0}', space=sflag, size = 0x8, scoped, tag = 'scoped memory for tpu_custom_call.1']
    #allocation6 [shape = 'u8[8192]{0}', space=vmem, size = 0x2000, scoped, tag = 'input window, operand 1']
    #allocation7 [shape = 's32[2]{0}', space=sflag, size = 0x8, scoped, tag = 'scoped memory for tpu_custom_call.1']
    #allocation8 [shape = 'u8[4096]{0}', space=vmem, size = 0x1000, scoped, tag = 'input window, operand 3']
    #allocation9 [shape = 'u8[16384]{0}', space=vmem, size = 0x4000, scoped, tag = 'input window, operand 5']
    #allocation10 [shape = 's32[2]{0}', space=sflag, size = 0x8, scoped, tag = 'scoped memory for tpu_custom_call.1']
    #allocation11 [shape = 'u8[1024]{0}', space=vmem, size = 0x400, scoped, tag = 'input window, operand 6']
    #allocation12 [shape = 'u8[16384]{0}', space=vmem, size = 0x4000, scoped, tag = 'input window, operand 9']
    #allocation13 [shape = 's32[2]{0}', space=sflag, size = 0x8, scoped, tag = 'scoped memory for tpu_custom_call.1']
    #allocation14 [shape = 'u8[16384]{0}', space=vmem, size = 0x4000, scoped, tag = 'input window, operand 13']
    #allocation15 [shape = 'u8[8192]{0}', space=vmem, size = 0x2000, scoped, tag = 'output window, operand 0']
    %20 = vsyncpa [#allocation4], 0
    %s21 = scalar_lea.sflag [#allocation4], 1
    %22 = vsyncpa %s21, 0
    %23 = vsyncpa [#allocation7], 0
    %s24 = scalar_lea.sflag [#allocation7], 1
    %25 = vsyncpa %s24, 0
    %26 = vsyncpa [#allocation10], 0
    %s27 = scalar_lea.sflag [#allocation10], 1
    %28 = vsyncpa %s27, 0
    %29 = vsyncpa [#allocation13], 0
    %s30 = scalar_lea.sflag [#allocation13], 1
    %31 = vsyncpa %s30, 0
    %32 = vsyncpa [#allocation5], 0
    %s33 = scalar_lea.sflag [#allocation5], 1
    %34 = vsyncpa %s33, 0
    loop: start=0, step=1, limit=6
    $region2: #{tpu_custom_call.1} parent=1 // loop_pre_header
      _
    $region3: #{tpu_custom_call.1} parent=1 // loop_header
      %s36 = sphi 0, %s40
      %p37 = scmp.ge.s32.totalorder %s36, 6
      %s43 = sphi 0, %s55
      %s44 = sphi 0, %s51
      %s45 = sphi 0, %s43
      %s46 = sphi 0, %s44
      %s47 = sphi 0, %s45
      %s48 = sphi 0, %s46
      %s58 = sphi 0, %s60
      %s61 = sphi 0, %s58
      %s62 = sphi 0, %s61
      %s78 = sphi 0, %s62
      %s84 = sphi 0, %s86
      %s87 = sphi 0, %s84
      %s88 = sphi 0, %s87
      %s104 = sphi 0, %s88
      %s110 = sphi 0, %s112
      %s113 = sphi 0, %s110
      %s114 = sphi 0, %s113
      %s130 = sphi 0, %s114
      %s136 = sphi 0, %s138
      %s139 = sphi 0, %s136
      %s140 = sphi 0, %s139
      %s156 = sphi 0, %s140
      %s162 = sphi 0, %s164
      %s165 = sphi 0, %s162
      %s166 = sphi 0, %s165
      %s182 = sphi 0, %s166
      %s188 = sphi 0, %s190
      %s191 = sphi 0, %s188
      %s192 = sphi 0, %s191
      %s208 = sphi 0, %s192
      %s214 = sphi 0, %s216
      %s217 = sphi 0, %s214
      %s218 = sphi 0, %s217
      %s234 = sphi 0, %s218
      %s240 = sphi 0, %s242
      %s243 = sphi 0, %s240
      %s244 = sphi 0, %s243
      %s260 = sphi 0, %s244
      %s266 = sphi 0, %s268
      %s269 = sphi 0, %s266
      %s270 = sphi 0, %s269
      %s286 = sphi 0, %s270
      %s292 = sphi 0, %s294
      %s295 = sphi 0, %s292
      %s296 = sphi 0, %s295
      %s312 = sphi 0, %s296
      %s318 = sphi 0, %s320
      %s321 = sphi 0, %s318
      %s322 = sphi 0, %s321
      %s338 = sphi 0, %s322
      %s344 = sphi 0, %s346
      %s347 = sphi 0, %s344
      %s348 = sphi 0, %s347
      %s364 = sphi 0, %s348
      %s370 = sphi 0, %s372
      %s373 = sphi 0, %s370
      %s374 = sphi 0, %s373
      %s390 = sphi 0, %s374
      %s396 = sphi 0, %s398
      %s399 = sphi 0, %s396
      %s400 = sphi 0, %s399
      %s416 = sphi 0, %s400
      %s422 = sphi 0, %s424
      %s425 = sphi 0, %s422
      %s426 = sphi 0, %s425
      %s442 = sphi 0, %s426
      %s448 = sphi 0, %s450
      %s451 = sphi 0, %s448
      %s452 = sphi 0, %s451
      %s468 = sphi 0, %s452
    $region4: #{tpu_custom_call.1} parent=1 // loop_header_branch
      %39 = sbr.rel (%p37) target = $region8
    $region5: #{tpu_custom_call.1} parent=1 // loop_body
      %s41 = ssub.s32 %s36, 1
      %s42 = ssub.s32 %s36, 2
      %s49 = sadd.s32 1, %s44
      %p50 = scmp.ge.s32.totalorder %s49, 2
      %s51 = scalar_select %p50, 0, %s49
      %s52 = sadd.s32 1, %s43
      %s53 = scalar_select %p50, %s52, %s43
      %p54 = scmp.ge.s32.totalorder %s53, 2
      %s55 = scalar_select %p54, 0, %s53
      %s56 = ssub.s32 %s43, %s55
      %p57 = scmp.eq.s32.totalorder %s56, 0
      %s59 = sadd.s32 %s58, 1
      %s60 = scalar_select %p57, %s58, %s59
      %p63 = pneg %p57
      %p64 = scmp.eq.s32.totalorder %s36, 3
      %p65 = por %p63, %p64
      %p66 = scmp.ne.s32.totalorder %s58, %s61
      %p67 = scmp.eq.s32.totalorder %s36, 0
      %p68 = por %p66, %p67
      %p69 = scmp.ne.s32.totalorder %s58, %s61
      %p70 = scmp.eq.s32.totalorder %s41, 3
      %p71 = por %p69, %p70
      %p72 = scmp.ne.s32.totalorder %s61, %s62
      %p73 = scmp.eq.s32.totalorder %s41, 0
      %p74 = por %p72, %p73
      %p75 = scmp.ne.s32.totalorder %s61, %s62
      %p76 = scmp.eq.s32.totalorder %s42, 3
      %p77 = por %p75, %p76
      %p79 = scmp.ne.s32.totalorder %s62, %s78
      %p80 = scmp.eq.s32.totalorder %s42, 0
      %p81 = por %p79, %p80
      %s82 = ssub.s32 %s43, %s55
      %p83 = scmp.eq.s32.totalorder %s82, 0
      %s85 = sadd.s32 %s84, 1
      %s86 = scalar_select %p83, %s84, %s85
      %p89 = pneg %p83
      %p90 = scmp.eq.s32.totalorder %s36, 3
      %p91 = por %p89, %p90
      %p92 = scmp.ne.s32.totalorder %s84, %s87
      %p93 = scmp.eq.s32.totalorder %s36, 0
      %p94 = por %p92, %p93
      %p95 = scmp.ne.s32.totalorder %s84, %s87
      %p96 = scmp.eq.s32.totalorder %s41, 3
      %p97 = por %p95, %p96
      %p98 = scmp.ne.s32.totalorder %s87, %s88
      %p99 = scmp.eq.s32.totalorder %s41, 0
      %p100 = por %p98, %p99
      %p101 = scmp.ne.s32.totalorder %s87, %s88
      %p102 = scmp.eq.s32.totalorder %s42, 3
      %p103 = por %p101, %p102
      %p105 = scmp.ne.s32.totalorder %s88, %s104
      %p106 = scmp.eq.s32.totalorder %s42, 0
      %p107 = por %p105, %p106
      %s108 = ssub.s32 %s43, %s55
      %p109 = scmp.eq.s32.totalorder %s108, 0
      %s111 = sadd.s32 %s110, 1
      %s112 = scalar_select %p109, %s110, %s111
      %p115 = pneg %p109
      %p116 = scmp.eq.s32.totalorder %s36, 3
      %p117 = por %p115, %p116
      %p118 = scmp.ne.s32.totalorder %s110, %s113
      %p119 = scmp.eq.s32.totalorder %s36, 0
      %p120 = por %p118, %p119
      %p121 = scmp.ne.s32.totalorder %s110, %s113
      %p122 = scmp.eq.s32.totalorder %s41, 3
      %p123 = por %p121, %p122
      %p124 = scmp.ne.s32.totalorder %s113, %s114
      %p125 = scmp.eq.s32.totalorder %s41, 0
      %p126 = por %p124, %p125
      %p127 = scmp.ne.s32.totalorder %s113, %s114
      %p128 = scmp.eq.s32.totalorder %s42, 3
      %p129 = por %p127, %p128
      %p131 = scmp.ne.s32.totalorder %s114, %s130
      %p132 = scmp.eq.s32.totalorder %s42, 0
      %p133 = por %p131, %p132
      %s134 = ssub.s32 %s43, %s55
      %p135 = scmp.eq.s32.totalorder %s134, 0
      %s137 = sadd.s32 %s136, 1
      %s138 = scalar_select %p135, %s136, %s137
      %p141 = pneg %p135
      %p142 = scmp.eq.s32.totalorder %s36, 3
      %p143 = por %p141, %p142
      %p144 = scmp.ne.s32.totalorder %s136, %s139
      %p145 = scmp.eq.s32.totalorder %s36, 0
      %p146 = por %p144, %p145
      %p147 = scmp.ne.s32.totalorder %s136, %s139
      %p148 = scmp.eq.s32.totalorder %s41, 3
      %p149 = por %p147, %p148
      %p150 = scmp.ne.s32.totalorder %s139, %s140
      %p151 = scmp.eq.s32.totalorder %s41, 0
      %p152 = por %p150, %p151
      %p153 = scmp.ne.s32.totalorder %s139, %s140
      %p154 = scmp.eq.s32.totalorder %s42, 3
      %p155 = por %p153, %p154
      %p157 = scmp.ne.s32.totalorder %s140, %s156
      %p158 = scmp.eq.s32.totalorder %s42, 0
      %p159 = por %p157, %p158
      %s160 = ssub.s32 %s43, %s55
      %p161 = scmp.eq.s32.totalorder %s160, 0
      %s163 = sadd.s32 %s162, 1
      %s164 = scalar_select %p161, %s162, %s163
      %p167 = pneg %p161
      %p168 = scmp.eq.s32.totalorder %s36, 3
      %p169 = por %p167, %p168
      %p170 = scmp.ne.s32.totalorder %s162, %s165
      %p171 = scmp.eq.s32.totalorder %s36, 0
      %p172 = por %p170, %p171
      %p173 = scmp.ne.s32.totalorder %s162, %s165
      %p174 = scmp.eq.s32.totalorder %s41, 3
      %p175 = por %p173, %p174
      %p176 = scmp.ne.s32.totalorder %s165, %s166
      %p177 = scmp.eq.s32.totalorder %s41, 0
      %p178 = por %p176, %p177
      %p179 = scmp.ne.s32.totalorder %s165, %s166
      %p180 = scmp.eq.s32.totalorder %s42, 3
      %p181 = por %p179, %p180
      %p183 = scmp.ne.s32.totalorder %s166, %s182
      %p184 = scmp.eq.s32.totalorder %s42, 0
      %p185 = por %p183, %p184
      %s186 = ssub.s32 %s44, %s51
      %p187 = scmp.eq.s32.totalorder %s186, 0
      %s189 = sadd.s32 %s188, 1
      %s190 = scalar_select %p187, %s188, %s189
      %p193 = pneg %p187
      %p194 = scmp.eq.s32.totalorder %s36, 3
      %p195 = por %p193, %p194
      %p196 = scmp.ne.s32.totalorder %s188, %s191
      %p197 = scmp.eq.s32.totalorder %s36, 0
      %p198 = por %p196, %p197
      %p199 = scmp.ne.s32.totalorder %s188, %s191
      %p200 = scmp.eq.s32.totalorder %s41, 3
      %p201 = por %p199, %p200
      %p202 = scmp.ne.s32.totalorder %s191, %s192
      %p203 = scmp.eq.s32.totalorder %s41, 0
      %p204 = por %p202, %p203
      %p205 = scmp.ne.s32.totalorder %s191, %s192
      %p206 = scmp.eq.s32.totalorder %s42, 3
      %p207 = por %p205, %p206
      %p209 = scmp.ne.s32.totalorder %s192, %s208
      %p210 = scmp.eq.s32.totalorder %s42, 0
      %p211 = por %p209, %p210
      %s212 = ssub.s32 %s44, %s51
      %p213 = scmp.eq.s32.totalorder %s212, 0
      %s215 = sadd.s32 %s214, 1
      %s216 = scalar_select %p213, %s214, %s215
      %p219 = pneg %p213
      %p220 = scmp.eq.s32.totalorder %s36, 3
      %p221 = por %p219, %p220
      %p222 = scmp.ne.s32.totalorder %s214, %s217
      %p223 = scmp.eq.s32.totalorder %s36, 0
      %p224 = por %p222, %p223
      %p225 = scmp.ne.s32.totalorder %s214, %s217
      %p226 = scmp.eq.s32.totalorder %s41, 3
      %p227 = por %p225, %p226
      %p228 = scmp.ne.s32.totalorder %s217, %s218
      %p229 = scmp.eq.s32.totalorder %s41, 0
      %p230 = por %p228, %p229
      %p231 = scmp.ne.s32.totalorder %s217, %s218
      %p232 = scmp.eq.s32.totalorder %s42, 3
      %p233 = por %p231, %p232
      %p235 = scmp.ne.s32.totalorder %s218, %s234
      %p236 = scmp.eq.s32.totalorder %s42, 0
      %p237 = por %p235, %p236
      %s238 = ssub.s32 %s44, %s51
      %p239 = scmp.eq.s32.totalorder %s238, 0
      %s241 = sadd.s32 %s240, 1
      %s242 = scalar_select %p239, %s240, %s241
      %p245 = pneg %p239
      %p246 = scmp.eq.s32.totalorder %s36, 3
      %p247 = por %p245, %p246
      %p248 = scmp.ne.s32.totalorder %s240, %s243
      %p249 = scmp.eq.s32.totalorder %s36, 0
      %p250 = por %p248, %p249
      %p251 = scmp.ne.s32.totalorder %s240, %s243
      %p252 = scmp.eq.s32.totalorder %s41, 3
      %p253 = por %p251, %p252
      %p254 = scmp.ne.s32.totalorder %s243, %s244
      %p255 = scmp.eq.s32.totalorder %s41, 0
      %p256 = por %p254, %p255
      %p257 = scmp.ne.s32.totalorder %s243, %s244
      %p258 = scmp.eq.s32.totalorder %s42, 3
      %p259 = por %p257, %p258
      %p261 = scmp.ne.s32.totalorder %s244, %s260
      %p262 = scmp.eq.s32.totalorder %s42, 0
      %p263 = por %p261, %p262
      %s264 = ssub.s32 %s44, %s51
      %p265 = scmp.eq.s32.totalorder %s264, 0
      %s267 = sadd.s32 %s266, 1
      %s268 = scalar_select %p265, %s266, %s267
      %p271 = pneg %p265
      %p272 = scmp.eq.s32.totalorder %s36, 3
      %p273 = por %p271, %p272
      %p274 = scmp.ne.s32.totalorder %s266, %s269
      %p275 = scmp.eq.s32.totalorder %s36, 0
      %p276 = por %p274, %p275
      %p277 = scmp.ne.s32.totalorder %s266, %s269
      %p278 = scmp.eq.s32.totalorder %s41, 3
      %p279 = por %p277, %p278
      %p280 = scmp.ne.s32.totalorder %s269, %s270
      %p281 = scmp.eq.s32.totalorder %s41, 0
      %p282 = por %p280, %p281
      %p283 = scmp.ne.s32.totalorder %s269, %s270
      %p284 = scmp.eq.s32.totalorder %s42, 3
      %p285 = por %p283, %p284
      %p287 = scmp.ne.s32.totalorder %s270, %s286
      %p288 = scmp.eq.s32.totalorder %s42, 0
      %p289 = por %p287, %p288
      %s290 = ssub.s32 %s44, %s51
      %p291 = scmp.eq.s32.totalorder %s290, 0
      %s293 = sadd.s32 %s292, 1
      %s294 = scalar_select %p291, %s292, %s293
      %p297 = pneg %p291
      %p298 = scmp.eq.s32.totalorder %s36, 3
      %p299 = por %p297, %p298
      %p300 = scmp.ne.s32.totalorder %s292, %s295
      %p301 = scmp.eq.s32.totalorder %s36, 0
      %p302 = por %p300, %p301
      %p303 = scmp.ne.s32.totalorder %s292, %s295
      %p304 = scmp.eq.s32.totalorder %s41, 3
      %p305 = por %p303, %p304
      %p306 = scmp.ne.s32.totalorder %s295, %s296
      %p307 = scmp.eq.s32.totalorder %s41, 0
      %p308 = por %p306, %p307
      %p309 = scmp.ne.s32.totalorder %s295, %s296
      %p310 = scmp.eq.s32.totalorder %s42, 3
      %p311 = por %p309, %p310
      %p313 = scmp.ne.s32.totalorder %s296, %s312
      %p314 = scmp.eq.s32.totalorder %s42, 0
      %p315 = por %p313, %p314
      %s316 = ssub.s32 %s44, %s51
      %p317 = scmp.eq.s32.totalorder %s316, 0
      %s319 = sadd.s32 %s318, 1
      %s320 = scalar_select %p317, %s318, %s319
      %p323 = pneg %p317
      %p324 = scmp.eq.s32.totalorder %s36, 3
      %p325 = por %p323, %p324
      %p326 = scmp.ne.s32.totalorder %s318, %s321
      %p327 = scmp.eq.s32.totalorder %s36, 0
      %p328 = por %p326, %p327
      %p329 = scmp.ne.s32.totalorder %s318, %s321
      %p330 = scmp.eq.s32.totalorder %s41, 3
      %p331 = por %p329, %p330
      %p332 = scmp.ne.s32.totalorder %s321, %s322
      %p333 = scmp.eq.s32.totalorder %s41, 0
      %p334 = por %p332, %p333
      %p335 = scmp.ne.s32.totalorder %s321, %s322
      %p336 = scmp.eq.s32.totalorder %s42, 3
      %p337 = por %p335, %p336
      %p339 = scmp.ne.s32.totalorder %s322, %s338
      %p340 = scmp.eq.s32.totalorder %s42, 0
      %p341 = por %p339, %p340
      %s342 = ssub.s32 %s44, %s51
      %p343 = scmp.eq.s32.totalorder %s342, 0
      %s345 = sadd.s32 %s344, 1
      %s346 = scalar_select %p343, %s344, %s345
      %p349 = pneg %p343
      %p350 = scmp.eq.s32.totalorder %s36, 3
      %p351 = por %p349, %p350
      %p352 = scmp.ne.s32.totalorder %s344, %s347
      %p353 = scmp.eq.s32.totalorder %s36, 0
      %p354 = por %p352, %p353
      %p355 = scmp.ne.s32.totalorder %s344, %s347
      %p356 = scmp.eq.s32.totalorder %s41, 3
      %p357 = por %p355, %p356
      %p358 = scmp.ne.s32.totalorder %s347, %s348
      %p359 = scmp.eq.s32.totalorder %s41, 0
      %p360 = por %p358, %p359
      %p361 = scmp.ne.s32.totalorder %s347, %s348
      %p362 = scmp.eq.s32.totalorder %s42, 3
      %p363 = por %p361, %p362
      %p365 = scmp.ne.s32.totalorder %s348, %s364
      %p366 = scmp.eq.s32.totalorder %s42, 0
      %p367 = por %p365, %p366
      %s368 = ssub.s32 %s44, %s51
      %p369 = scmp.eq.s32.totalorder %s368, 0
      %s371 = sadd.s32 %s370, 1
      %s372 = scalar_select %p369, %s370, %s371
      %p375 = pneg %p369
      %p376 = scmp.eq.s32.totalorder %s36, 3
      %p377 = por %p375, %p376
      %p378 = scmp.ne.s32.totalorder %s370, %s373
      %p379 = scmp.eq.s32.totalorder %s36, 0
      %p380 = por %p378, %p379
      %p381 = scmp.ne.s32.totalorder %s370, %s373
      %p382 = scmp.eq.s32.totalorder %s41, 3
      %p383 = por %p381, %p382
      %p384 = scmp.ne.s32.totalorder %s373, %s374
      %p385 = scmp.eq.s32.totalorder %s41, 0
      %p386 = por %p384, %p385
      %p387 = scmp.ne.s32.totalorder %s373, %s374
      %p388 = scmp.eq.s32.totalorder %s42, 3
      %p389 = por %p387, %p388
      %p391 = scmp.ne.s32.totalorder %s374, %s390
      %p392 = scmp.eq.s32.totalorder %s42, 0
      %p393 = por %p391, %p392
      %s394 = ssub.s32 %s44, %s51
      %p395 = scmp.eq.s32.totalorder %s394, 0
      %s397 = sadd.s32 %s396, 1
      %s398 = scalar_select %p395, %s396, %s397
      %p401 = pneg %p395
      %p402 = scmp.eq.s32.totalorder %s36, 3
      %p403 = por %p401, %p402
      %p404 = scmp.ne.s32.totalorder %s396, %s399
      %p405 = scmp.eq.s32.totalorder %s36, 0
      %p406 = por %p404, %p405
      %p407 = scmp.ne.s32.totalorder %s396, %s399
      %p408 = scmp.eq.s32.totalorder %s41, 3
      %p409 = por %p407, %p408
      %p410 = scmp.ne.s32.totalorder %s399, %s400
      %p411 = scmp.eq.s32.totalorder %s41, 0
      %p412 = por %p410, %p411
      %p413 = scmp.ne.s32.totalorder %s399, %s400
      %p414 = scmp.eq.s32.totalorder %s42, 3
      %p415 = por %p413, %p414
      %p417 = scmp.ne.s32.totalorder %s400, %s416
      %p418 = scmp.eq.s32.totalorder %s42, 0
      %p419 = por %p417, %p418
      %s420 = ssub.s32 %s44, %s51
      %p421 = scmp.eq.s32.totalorder %s420, 0
      %s423 = sadd.s32 %s422, 1
      %s424 = scalar_select %p421, %s422, %s423
      %p427 = pneg %p421
      %p428 = scmp.eq.s32.totalorder %s36, 3
      %p429 = por %p427, %p428
      %p430 = scmp.ne.s32.totalorder %s422, %s425
      %p431 = scmp.eq.s32.totalorder %s36, 0
      %p432 = por %p430, %p431
      %p433 = scmp.ne.s32.totalorder %s422, %s425
      %p434 = scmp.eq.s32.totalorder %s41, 3
      %p435 = por %p433, %p434
      %p436 = scmp.ne.s32.totalorder %s425, %s426
      %p437 = scmp.eq.s32.totalorder %s41, 0
      %p438 = por %p436, %p437
      %p439 = scmp.ne.s32.totalorder %s425, %s426
      %p440 = scmp.eq.s32.totalorder %s42, 3
      %p441 = por %p439, %p440
      %p443 = scmp.ne.s32.totalorder %s426, %s442
      %p444 = scmp.eq.s32.totalorder %s42, 0
      %p445 = por %p443, %p444
      %s446 = ssub.s32 %s43, %s55
      %p447 = scmp.eq.s32.totalorder %s446, 0
      %s449 = sadd.s32 %s448, 1
      %s450 = scalar_select %p447, %s448, %s449
      %p453 = pneg %p447
      %p454 = scmp.eq.s32.totalorder %s36, 3
      %p455 = por %p453, %p454
      %p456 = scmp.ne.s32.totalorder %s448, %s451
      %p457 = scmp.eq.s32.totalorder %s36, 0
      %p458 = por %p456, %p457
      %p459 = scmp.ne.s32.totalorder %s448, %s451
      %p460 = scmp.eq.s32.totalorder %s41, 3
      %p461 = por %p459, %p460
      %p462 = scmp.ne.s32.totalorder %s451, %s452
      %p463 = scmp.eq.s32.totalorder %s41, 0
      %p464 = por %p462, %p463
      %p465 = scmp.ne.s32.totalorder %s451, %s452
      %p466 = scmp.eq.s32.totalorder %s42, 3
      %p467 = por %p465, %p466
      %p469 = scmp.ne.s32.totalorder %s452, %s468
      %p470 = scmp.eq.s32.totalorder %s42, 0
      %p471 = por %p469, %p470
      %p472 = scmp.le.s32.totalorder 1, %s36
      %p473 = scmp.lt.s32.totalorder %s36, 5
      %p474 = pnand %p472, %p473
      %p475 = pneg %p474
      // Predicated region
      $region9: #{tpu_custom_call.1} parent=5 // pred_check
        _
      $region10: #{tpu_custom_call.1} parent=5 // pred_check_branch
        %477 = sbr.rel (%p474) target = $region12
      $region11: #{tpu_custom_call.1} parent=5 // pred_region
        %s478 = ssub.s32 %s36, 1
      $region12: #{tpu_custom_call.1} parent=5 // pred_fallthru
        _
      %p479 = scmp.lt.s32.totalorder %s36, 4
      // Predicated region
      $region13: #{tpu_custom_call.1} parent=5 // pred_check
        %p480 = pneg %p479
      $region14: #{tpu_custom_call.1} parent=5 // pred_check_branch
        %482 = sbr.rel (%p480) target = $region16
      $region15: #{tpu_custom_call.1} parent=5 // pred_region
        // Predicated region
        $region17: #{tpu_custom_call.1} parent=15 // pred_check
          %p483 = pneg %p68
        $region18: #{tpu_custom_call.1} parent=15 // pred_check_branch
          %485 = sbr.rel (%p483) target = $region20
        $region19: #{tpu_custom_call.1} parent=15 // pred_region
          %s486 = sand.u32 %s58, 1
          %s487 = scalar_lea.sflag [#allocation4], %s486
          %s488 = sand.u32 %s58, 1
          %s489 = smul.addr %s488, 8
          %s490 = scalar_lea.vmem [#allocation3], %s489
          %s492 = ssub.s32 128, 128
          %493 = vsyncadd %s487, %s492
          %s494 = smul.addr %s43, 128
          %s495 = scalar_lea.hbm %s0, %s494
          %s497 = sshll.u32 %s490, 4
          %s498 = int_to_ptr.vmem [resolvable:$true] %s497
          %500 = dma.hbm_to_vmem [thread:$0]  %s495, 128, %s498, %s487
        $region20: #{tpu_custom_call.1} parent=15 // pred_fallthru
          _
        // Predicated region
        $region21: #{tpu_custom_call.1} parent=15 // pred_check
          %p501 = pneg %p94
        $region22: #{tpu_custom_call.1} parent=15 // pred_check_branch
          %503 = sbr.rel (%p501) target = $region24
        $region23: #{tpu_custom_call.1} parent=15 // pred_region
          %s504 = sand.u32 %s36, 1
          %s505 = scalar_lea.sflag [#allocation7], %s504
          %s506 = sand.u32 %s84, 1
          %s507 = smul.addr %s506, 8
          %s508 = scalar_lea.vmem [#allocation6], %s507
          %s510 = ssub.s32 128, 128
          %511 = vsyncadd %s505, %s510
          %s512 = smul.addr %s43, 2
          %s513 = smul.addr %s512, 64
          %s514 = scalar_lea.hbm %s1, %s513
          %s515 = sshll.u32 %s508, 4
          %s516 = int_to_ptr.vmem [resolvable:$true] %s515
          %521 = dma.hbm_to_vmem [thread:$0]  %s514, 128, %s516, %s505, 64, 64, 4
        $region24: #{tpu_custom_call.1} parent=15 // pred_fallthru
          _
        // Predicated region
        $region25: #{tpu_custom_call.1} parent=15 // pred_check
          %p522 = pneg %p120
        $region26: #{tpu_custom_call.1} parent=15 // pred_check_branch
          %524 = sbr.rel (%p522) target = $region28
        $region27: #{tpu_custom_call.1} parent=15 // pred_region
          %p525 = scmp.lt.s32.totalorder %s43, 1
          %s526 = scalar_select %p525, %s43, 1
          %s527 = smul.addr %s526, 8
          %s528 = scalar_lea.vmem %s2, %s527
        $region28: #{tpu_custom_call.1} parent=15 // pred_fallthru
          _
        // Predicated region
        $region29: #{tpu_custom_call.1} parent=15 // pred_check
          %p529 = pneg %p146
        $region30: #{tpu_custom_call.1} parent=15 // pred_check_branch
          %531 = sbr.rel (%p529) target = $region32
        $region31: #{tpu_custom_call.1} parent=15 // pred_region
          %s532 = sand.u32 %s36, 1
          %s533 = scalar_lea.sflag [#allocation7], %s532
          %s534 = sand.u32 %s136, 1
          %s535 = smul.addr %s534, 4
          %s536 = scalar_lea.vmem [#allocation8], %s535
          %s538 = ssub.s32 64, 64
          %539 = vsyncadd %s533, %s538
          %s540 = smul.addr %s43, 64
          %s541 = scalar_lea.hbm %s3, %s540
          %s543 = sshll.u32 %s536, 4
          %s544 = int_to_ptr.vmem [resolvable:$true] %s543
          %546 = dma.hbm_to_vmem [thread:$0]  %s541, 64, %s544, %s533
        $region32: #{tpu_custom_call.1} parent=15 // pred_fallthru
          _
        // Predicated region
        $region33: #{tpu_custom_call.1} parent=15 // pred_check
          %p547 = pneg %p172
        $region34: #{tpu_custom_call.1} parent=15 // pred_check_branch
          %549 = sbr.rel (%p547) target = $region36
        $region35: #{tpu_custom_call.1} parent=15 // pred_region
          %p550 = scmp.lt.s32.totalorder %s43, 1
          %s551 = scalar_select %p550, %s43, 1
          %s552 = scalar_lea.vmem %s4, %s551
        $region36: #{tpu_custom_call.1} parent=15 // pred_fallthru
          _
        // Predicated region
        $region37: #{tpu_custom_call.1} parent=15 // pred_check
          %p553 = pneg %p198
        $region38: #{tpu_custom_call.1} parent=15 // pred_check_branch
          %555 = sbr.rel (%p553) target = $region40
        $region39: #{tpu_custom_call.1} parent=15 // pred_region
          %s556 = sand.u32 %s36, 1
          %s557 = scalar_lea.sflag [#allocation10], %s556
          %s558 = sand.u32 %s188, 1
          %s559 = smul.addr %s558, 16
          %s560 = scalar_lea.vmem [#allocation9], %s559
          %s562 = ssub.s32 256, 256
          %563 = vsyncadd %s557, %s562
          %s564 = smul.addr %s44, 4
          %s565 = smul.addr %s564, 64
          %s566 = scalar_lea.hbm %s5, %s565
          %s567 = sshll.u32 %s560, 4
          %s568 = int_to_ptr.vmem [resolvable:$true] %s567
          %573 = dma.hbm_to_vmem [thread:$0]  %s566, 256, %s568, %s557, 64, 64, 4
        $region40: #{tpu_custom_call.1} parent=15 // pred_fallthru
          _
        // Predicated region
        $region41: #{tpu_custom_call.1} parent=15 // pred_check
          %p574 = pneg %p224
        $region42: #{tpu_custom_call.1} parent=15 // pred_check_branch
          %576 = sbr.rel (%p574) target = $region44
        $region43: #{tpu_custom_call.1} parent=15 // pred_region
          %s577 = sand.u32 %s36, 1
          %s578 = scalar_lea.sflag [#allocation10], %s577
          %s579 = sand.u32 %s214, 1
          %s580 = scalar_lea.vmem [#allocation11], %s579
          %s582 = ssub.s32 16, 16
          %583 = vsyncadd %s578, %s582
          %s584 = smul.addr %s44, 16
          %s585 = scalar_lea.hbm %s6, %s584
          %s587 = sshll.u32 %s580, 4
          %s588 = int_to_ptr.vmem [resolvable:$true] %s587
          %590 = dma.hbm_to_vmem [thread:$0]  %s585, 16, %s588, %s578
        $region44: #{tpu_custom_call.1} parent=15 // pred_fallthru
          _
        // Predicated region
        $region45: #{tpu_custom_call.1} parent=15 // pred_check
          %p591 = pneg %p250
        $region46: #{tpu_custom_call.1} parent=15 // pred_check_branch
          %593 = sbr.rel (%p591) target = $region48
        $region47: #{tpu_custom_call.1} parent=15 // pred_region
          %p594 = scmp.lt.s32.totalorder %s44, 1
          %s595 = scalar_select %p594, %s44, 1
          %s596 = smul.addr %s595, 6
          %s597 = smul.addr %s596, 4
          %s598 = scalar_lea.vmem %s7, %s597
        $region48: #{tpu_custom_call.1} parent=15 // pred_fallthru
          _
        // Predicated region
        $region49: #{tpu_custom_call.1} parent=15 // pred_check
          %p599 = pneg %p276
        $region50: #{tpu_custom_call.1} parent=15 // pred_check_branch
          %601 = sbr.rel (%p599) target = $region52
        $region51: #{tpu_custom_call.1} parent=15 // pred_region
          %p602 = scmp.lt.s32.totalorder %s44, 1
          %s603 = scalar_select %p602, %s44, 1
          %s604 = scalar_lea.vmem %s8, %s603
        $region52: #{tpu_custom_call.1} parent=15 // pred_fallthru
          _
        // Predicated region
        $region53: #{tpu_custom_call.1} parent=15 // pred_check
          %p605 = pneg %p302
        $region54: #{tpu_custom_call.1} parent=15 // pred_check_branch
          %607 = sbr.rel (%p605) target = $region56
        $region55: #{tpu_custom_call.1} parent=15 // pred_region
          %s608 = sand.u32 %s36, 1
          %s609 = scalar_lea.sflag [#allocation13], %s608
          %s610 = sand.u32 %s292, 1
          %s611 = smul.addr %s610, 16
          %s612 = scalar_lea.vmem [#allocation12], %s611
          %s614 = ssub.s32 256, 256
          %615 = vsyncadd %s609, %s614
          %s616 = smul.addr %s44, 4
          %s617 = smul.addr %s616, 64
          %s618 = scalar_lea.hbm %s9, %s617
          %s619 = sshll.u32 %s612, 4
          %s620 = int_to_ptr.vmem [resolvable:$true] %s619
          %625 = dma.hbm_to_vmem [thread:$0]  %s618, 256, %s620, %s609, 64, 64, 4
        $region56: #{tpu_custom_call.1} parent=15 // pred_fallthru
          _
        // Predicated region
        $region57: #{tpu_custom_call.1} parent=15 // pred_check
          %p626 = pneg %p328
        $region58: #{tpu_custom_call.1} parent=15 // pred_check_branch
          %628 = sbr.rel (%p626) target = $region60
        $region59: #{tpu_custom_call.1} parent=15 // pred_region
          %p629 = scmp.lt.s32.totalorder %s44, 1
          %s630 = scalar_select %p629, %s44, 1
          %s631 = scalar_lea.vmem %s10, %s630
        $region60: #{tpu_custom_call.1} parent=15 // pred_fallthru
          _
        // Predicated region
        $region61: #{tpu_custom_call.1} parent=15 // pred_check
          %p632 = pneg %p354
        $region62: #{tpu_custom_call.1} parent=15 // pred_check_branch
          %634 = sbr.rel (%p632) target = $region64
        $region63: #{tpu_custom_call.1} parent=15 // pred_region
          %p635 = scmp.lt.s32.totalorder %s44, 1
          %s636 = scalar_select %p635, %s44, 1
          %s637 = scalar_lea.vmem %s11, %s636
        $region64: #{tpu_custom_call.1} parent=15 // pred_fallthru
          _
        // Predicated region
        $region65: #{tpu_custom_call.1} parent=15 // pred_check
          %p638 = pneg %p380
        $region66: #{tpu_custom_call.1} parent=15 // pred_check_branch
          %640 = sbr.rel (%p638) target = $region68
        $region67: #{tpu_custom_call.1} parent=15 // pred_region
          %p641 = scmp.lt.s32.totalorder %s44, 1
          %s642 = scalar_select %p641, %s44, 1
          %s643 = scalar_lea.vmem %s12, %s642
        $region68: #{tpu_custom_call.1} parent=15 // pred_fallthru
          _
        // Predicated region
        $region69: #{tpu_custom_call.1} parent=15 // pred_check
          %p644 = pneg %p406
        $region70: #{tpu_custom_call.1} parent=15 // pred_check_branch
          %646 = sbr.rel (%p644) target = $region72
        $region71: #{tpu_custom_call.1} parent=15 // pred_region
          %s647 = sand.u32 %s36, 1
          %s648 = scalar_lea.sflag [#allocation13], %s647
          %s649 = sand.u32 %s396, 1
          %s650 = smul.addr %s649, 16
          %s651 = scalar_lea.vmem [#allocation14], %s650
          %s653 = ssub.s32 256, 256
          %654 = vsyncadd %s648, %s653
          %s655 = smul.addr %s44, 4
          %s656 = smul.addr %s655, 64
          %s657 = scalar_lea.hbm %s13, %s656
          %s658 = sshll.u32 %s651, 4
          %s659 = int_to_ptr.vmem [resolvable:$true] %s658
          %664 = dma.hbm_to_vmem [thread:$0]  %s657, 256, %s659, %s648, 64, 64, 4
        $region72: #{tpu_custom_call.1} parent=15 // pred_fallthru
          _
        // Predicated region
        $region73: #{tpu_custom_call.1} parent=15 // pred_check
          %p665 = pneg %p432
        $region74: #{tpu_custom_call.1} parent=15 // pred_check_branch
          %667 = sbr.rel (%p665) target = $region76
        $region75: #{tpu_custom_call.1} parent=15 // pred_region
          %p668 = scmp.lt.s32.totalorder %s44, 1
          %s669 = scalar_select %p668, %s44, 1
          %s670 = scalar_lea.vmem %s14, %s669
        $region76: #{tpu_custom_call.1} parent=15 // pred_fallthru
          _
      $region16: #{tpu_custom_call.1} parent=5 // pred_fallthru
        _
      %p671 = scmp.le.s32.totalorder 1, %s36
      %p672 = scmp.lt.s32.totalorder %s36, 5
      %p673 = pnand %p671, %p672
      %p674 = pneg %p673
      // Predicated region
      $region77: #{tpu_custom_call.1} parent=5 // pred_check
        _
      $region78: #{tpu_custom_call.1} parent=5 // pred_check_branch
        %676 = sbr.rel (%p673) target = $region80
      $region79: #{tpu_custom_call.1} parent=5 // pred_region
        %s677 = ssub.s32 %s36, 1
        %s678 = sand.u32 %s61, 1
        %s679 = scalar_lea.sflag [#allocation4], %s678
        %s680 = sand.u32 %s61, 1
        %s681 = smul.addr %s680, 8
        %s682 = scalar_lea.vmem [#allocation3], %s681
        // Predicated region
        $region81: #{tpu_custom_call.1} parent=79 // pred_check
          %p683 = pneg %p74
        $region82: #{tpu_custom_call.1} parent=79 // pred_check_branch
          %685 = sbr.rel (%p683) target = $region84
        $region83: #{tpu_custom_call.1} parent=79 // pred_region
          %686 = dma.done %s679, 128
        $region84: #{tpu_custom_call.1} parent=79 // pred_fallthru
          _
        %s687 = sand.u32 %s41, 1
        %s688 = scalar_lea.sflag [#allocation7], %s687
        %s689 = sand.u32 %s87, 1
        %s690 = smul.addr %s689, 8
        %s691 = scalar_lea.vmem [#allocation6], %s690
        // Predicated region
        $region85: #{tpu_custom_call.1} parent=79 // pred_check
          %p692 = pneg %p100
        $region86: #{tpu_custom_call.1} parent=79 // pred_check_branch
          %694 = sbr.rel (%p692) target = $region88
        $region87: #{tpu_custom_call.1} parent=79 // pred_region
          %695 = dma.done %s688, 128
        $region88: #{tpu_custom_call.1} parent=79 // pred_fallthru
          _
        %s696 = sand.u32 %s41, 1
        %s697 = scalar_lea.sflag [#allocation7], %s696
        %s698 = sand.u32 %s139, 1
        %s699 = smul.addr %s698, 4
        %s700 = scalar_lea.vmem [#allocation8], %s699
        // Predicated region
        $region89: #{tpu_custom_call.1} parent=79 // pred_check
          %p701 = pneg %p152
        $region90: #{tpu_custom_call.1} parent=79 // pred_check_branch
          %703 = sbr.rel (%p701) target = $region92
        $region91: #{tpu_custom_call.1} parent=79 // pred_region
          %704 = dma.done %s697, 64
        $region92: #{tpu_custom_call.1} parent=79 // pred_fallthru
          _
        %s705 = sand.u32 %s41, 1
        %s706 = scalar_lea.sflag [#allocation10], %s705
        %s707 = sand.u32 %s191, 1
        %s708 = smul.addr %s707, 16
        %s709 = scalar_lea.vmem [#allocation9], %s708
        // Predicated region
        $region93: #{tpu_custom_call.1} parent=79 // pred_check
          %p710 = pneg %p204
        $region94: #{tpu_custom_call.1} parent=79 // pred_check_branch
          %712 = sbr.rel (%p710) target = $region96
        $region95: #{tpu_custom_call.1} parent=79 // pred_region
          %713 = dma.done %s706, 256
        $region96: #{tpu_custom_call.1} parent=79 // pred_fallthru
          _
        %s714 = sand.u32 %s41, 1
        %s715 = scalar_lea.sflag [#allocation10], %s714
        %s716 = sand.u32 %s217, 1
        %s717 = scalar_lea.vmem [#allocation11], %s716
        // Predicated region
        $region97: #{tpu_custom_call.1} parent=79 // pred_check
          %p718 = pneg %p230
        $region98: #{tpu_custom_call.1} parent=79 // pred_check_branch
          %720 = sbr.rel (%p718) target = $region100
        $region99: #{tpu_custom_call.1} parent=79 // pred_region
          %721 = dma.done %s715, 16
        $region100: #{tpu_custom_call.1} parent=79 // pred_fallthru
          _
        %s722 = sand.u32 %s41, 1
        %s723 = scalar_lea.sflag [#allocation13], %s722
        %s724 = sand.u32 %s295, 1
        %s725 = smul.addr %s724, 16
        %s726 = scalar_lea.vmem [#allocation12], %s725
        // Predicated region
        $region101: #{tpu_custom_call.1} parent=79 // pred_check
          %p727 = pneg %p308
        $region102: #{tpu_custom_call.1} parent=79 // pred_check_branch
          %729 = sbr.rel (%p727) target = $region104
        $region103: #{tpu_custom_call.1} parent=79 // pred_region
          %730 = dma.done %s723, 256
        $region104: #{tpu_custom_call.1} parent=79 // pred_fallthru
          _
        %s731 = sand.u32 %s41, 1
        %s732 = scalar_lea.sflag [#allocation13], %s731
        %s733 = sand.u32 %s399, 1
        %s734 = smul.addr %s733, 16
        %s735 = scalar_lea.vmem [#allocation14], %s734
        // Predicated region
        $region105: #{tpu_custom_call.1} parent=79 // pred_check
          %p736 = pneg %p412
        $region106: #{tpu_custom_call.1} parent=79 // pred_check_branch
          %738 = sbr.rel (%p736) target = $region108
        $region107: #{tpu_custom_call.1} parent=79 // pred_region
          %739 = dma.done %s732, 256
        $region108: #{tpu_custom_call.1} parent=79 // pred_fallthru
          _
        %s740 = sand.u32 %s61, 1
        %s741 = scalar_lea.sflag [#allocation4], %s740
        %s742 = sand.u32 %s61, 1
        %s743 = smul.addr %s742, 8
        %s744 = scalar_lea.vmem [#allocation3], %s743
        %p745 = pneg %p74
        %p746 = pneg %p71
        %s747 = sand.u32 %s41, 1
        %s748 = scalar_lea.sflag [#allocation7], %s747
        %s749 = sand.u32 %s87, 1
        %s750 = smul.addr %s749, 8
        %s751 = scalar_lea.vmem [#allocation6], %s750
        %p752 = pneg %p100
        %p753 = pneg %p97
        %p754 = scmp.lt.s32.totalorder %s45, 1
        %s755 = scalar_select %p754, %s45, 1
        %s756 = smul.addr %s755, 8
        %s757 = scalar_lea.vmem %s2, %s756
        %p758 = pneg %p126
        %p759 = pneg %p123
        %s760 = sand.u32 %s41, 1
        %s761 = scalar_lea.sflag [#allocation7], %s760
        %s762 = sand.u32 %s139, 1
        %s763 = smul.addr %s762, 4
        %s764 = scalar_lea.vmem [#allocation8], %s763
        %p765 = pneg %p152
        %p766 = pneg %p149
        %p767 = scmp.lt.s32.totalorder %s45, 1
        %s768 = scalar_select %p767, %s45, 1
        %s769 = scalar_lea.vmem %s4, %s768
        %p770 = pneg %p178
        %p771 = pneg %p175
        %s772 = sand.u32 %s41, 1
        %s773 = scalar_lea.sflag [#allocation10], %s772
        %s774 = sand.u32 %s191, 1
        %s775 = smul.addr %s774, 16
        %s776 = scalar_lea.vmem [#allocation9], %s775
        %p777 = pneg %p204
        %p778 = pneg %p201
        %s779 = sand.u32 %s41, 1
        %s780 = scalar_lea.sflag [#allocation10], %s779
        %s781 = sand.u32 %s217, 1
        %s782 = scalar_lea.vmem [#allocation11], %s781
        %p783 = pneg %p230
        %p784 = pneg %p227
        %p785 = scmp.lt.s32.totalorder %s46, 1
        %s786 = scalar_select %p785, %s46, 1
        %s787 = smul.addr %s786, 6
        %s788 = smul.addr %s787, 4
        %s789 = scalar_lea.vmem %s7, %s788
        %p790 = pneg %p256
        %p791 = pneg %p253
        %p792 = scmp.lt.s32.totalorder %s46, 1
        %s793 = scalar_select %p792, %s46, 1
        %s794 = scalar_lea.vmem %s8, %s793
        %p795 = pneg %p282
        %p796 = pneg %p279
        %s797 = sand.u32 %s41, 1
        %s798 = scalar_lea.sflag [#allocation13], %s797
        %s799 = sand.u32 %s295, 1
        %s800 = smul.addr %s799, 16
        %s801 = scalar_lea.vmem [#allocation12], %s800
        %p802 = pneg %p308
        %p803 = pneg %p305
        %p804 = scmp.lt.s32.totalorder %s46, 1
        %s805 = scalar_select %p804, %s46, 1
        %s806 = scalar_lea.vmem %s10, %s805
        %p807 = pneg %p334
        %p808 = pneg %p331
        %p809 = scmp.lt.s32.totalorder %s46, 1
        %s810 = scalar_select %p809, %s46, 1
        %s811 = scalar_lea.vmem %s11, %s810
        %p812 = pneg %p360
        %p813 = pneg %p357
        %p814 = scmp.lt.s32.totalorder %s46, 1
        %s815 = scalar_select %p814, %s46, 1
        %s816 = scalar_lea.vmem %s12, %s815
        %p817 = pneg %p386
        %p818 = pneg %p383
        %s819 = sand.u32 %s41, 1
        %s820 = scalar_lea.sflag [#allocation13], %s819
        %s821 = sand.u32 %s399, 1
        %s822 = smul.addr %s821, 16
        %s823 = scalar_lea.vmem [#allocation14], %s822
        %p824 = pneg %p412
        %p825 = pneg %p409
        %p826 = scmp.lt.s32.totalorder %s46, 1
        %s827 = scalar_select %p826, %s46, 1
        %s828 = scalar_lea.vmem %s14, %s827
        %p829 = pneg %p438
        %p830 = pneg %p435
        %p831 = pneg %p464
        %p832 = pneg %p461
        %s833 = sand.u32 %s451, 1
        %s834 = scalar_lea.sflag [#allocation5], %s833
        %s835 = sand.u32 %s451, 1
        %s836 = smul.addr %s835, 8
        %s837 = scalar_lea.vmem [#allocation15], %s836
        %p838 = scmp.lt.s32.totalorder %s45, 1
        %s839 = scalar_select %p838, %s45, 1
        %s840 = smul.addr %s839, 8
        %s841 = scalar_lea.vmem %s2, %s840
        %p842 = scmp.lt.s32.totalorder %s45, 1
        %s843 = scalar_select %p842, %s45, 1
        %s844 = scalar_lea.vmem %s4, %s843
        %p845 = scmp.lt.s32.totalorder %s46, 1
        %s846 = scalar_select %p845, %s46, 1
        %s847 = smul.addr %s846, 6
        %s848 = smul.addr %s847, 4
        %s849 = scalar_lea.vmem %s7, %s848
        %p850 = scmp.lt.s32.totalorder %s46, 1
        %s851 = scalar_select %p850, %s46, 1
        %s852 = scalar_lea.vmem %s8, %s851
        %p853 = scmp.lt.s32.totalorder %s46, 1
        %s854 = scalar_select %p853, %s46, 1
        %s855 = scalar_lea.vmem %s10, %s854
        %p856 = scmp.lt.s32.totalorder %s46, 1
        %s857 = scalar_select %p856, %s46, 1
        %s858 = scalar_lea.vmem %s11, %s857
        %p859 = scmp.lt.s32.totalorder %s46, 1
        %s860 = scalar_select %p859, %s46, 1
        %s861 = scalar_lea.vmem %s12, %s860
        %p862 = scmp.lt.s32.totalorder %s46, 1
        %s863 = scalar_select %p862, %s46, 1
        %s864 = scalar_lea.vmem %s14, %s863
        %p866 = scmp.eq.s32.totalorder %s46, 0
        // Predicated region
        $region109: #{tpu_custom_call.1} parent=79 // pred_check
          %p867 = pneg %p866
        $region110: #{tpu_custom_call.1} parent=79 // pred_check_branch
          %869 = sbr.rel (%p867) target = $region112
        $region111: #{tpu_custom_call.1} parent=79 // pred_region
          %v870 = vld [vmem:[%s682] sm:$0xff]
          %vm871 = vcmask 261120
          %872 = vst.msk [vmem:[#allocation2] sm:$0xff] %vm871, %v870
        $region112: #{tpu_custom_call.1} parent=79 // pred_fallthru
          _
        %v873 = vld [vmem:[#allocation2] sm:$0xff]
        %v874 = vpack.c.bf16 %v873, %v873
        %v875 = vld [vmem:[%s709] sm:$0xf]
        %v876 = vld [vmem:[%s709 + $0x4] sm:$0xf]
        %v877 = vld [vmem:[%s709 + $0x8] sm:$0xf]
        %v878 = vld [vmem:[%s709 + $0xc] sm:$0xf]
        %v879 = vld [vmem:[%s717] sm:$0x1]
        %v881 = vlaneseq
        %v882 = vshrl.u32 %v881, 7
        %v883 = vsub.s32 0, %v882
        %v884 = vrot.slane %v879, %v883
        %v890 = vunpack.c.l.b16 %v875
        %v891 = vunpack.c.l.b16 %v876
        %v892 = vunpack.c.l.b16 %v877
        %v893 = vunpack.c.l.b16 %v878
        %v894 = vpack.c.b16 %v891, %v890
        %v895 = vpack.c.b16 %v893, %v892
        %vm898 = vcmask 261120
        %v900 = vsel %vm898, %v874, 0
        %902 = vmatprep.subr.bf16.mxu0 0
        %903 = vmatpush1.bf16.msra.mxu0 %v894
        %904 = vmatprep.subr.bf16.mxu0 0
        %905 = vmatpush1.bf16.msra.mxu0 %v895
        %906 = vmatprep.subr.bf16.mxu0 0
        %907 = vmatpush1.bf16.msra.mxu0 0
        %908 = vmatprep.subr.bf16.mxu0 0
        %909 = vmatpush1.bf16.msra.mxu0 0
        %910 = vmatprep.subr.bf16.mxu0 0
        %911 = vmatpush1.bf16.msra.mxu0 0
        %912 = vmatprep.subr.bf16.mxu0 0
        %913 = vmatpush1.bf16.msra.mxu0 0
        %914 = vmatprep.subr.bf16.mxu0 0
        %915 = vmatpush1.bf16.msra.mxu0 0
        %916 = vmatprep.subr.bf16.mxu0 0
        %917 = vmatpush1.bf16.msra.mxu0 0
        %918 = vmatprep.subr.bf16.mxu0 0
        %919 = vmatpush1.bf16.msra.mxu0 0
        %920 = vmatprep.subr.bf16.mxu0 0
        %921 = vmatpush1.bf16.msra.mxu0 0
        %922 = vmatprep.subr.bf16.mxu0 0
        %923 = vmatpush1.bf16.msra.mxu0 0
        %924 = vmatprep.subr.bf16.mxu0 0
        %925 = vmatpush1.bf16.msra.mxu0 0
        %926 = vmatprep.subr.bf16.mxu0 0
        %927 = vmatpush1.bf16.msra.mxu0 0
        %928 = vmatprep.subr.bf16.mxu0 0
        %929 = vmatpush1.bf16.msra.mxu0 0
        %930 = vmatprep.subr.bf16.mxu0 0
        %931 = vmatpush1.bf16.msra.mxu0 0
        %932 = vmatprep.subr.bf16.mxu0 0
        %933 = vmatpush1.bf16.msra.mxu0 0
        %934 = vmatprep.mubr.bf16.mxu0 0
        %935 = vmatmul.mubr.bf16.gmra.mrb[0].mxu0 %v900
        %v936 = vpop.f32.mrb[0].mxu0
        %v937 = vadd.f32 %v884, %v936
        %v938 = vpop.f32.mrb[0].mxu0
        %v939 = vpop.f32.mrb[0].mxu0
        %v940 = vpop.f32.mrb[0].mxu0
        %941 = vdwg.mxu0
        %v942 = vld [vmem:[%s691] sm:$0xf]
        %v943 = vld [vmem:[%s691 + $0x4] sm:$0xf]
        %v944 = vld [vmem:[%s849] sm:$0xf]
        %v945 = vld [vmem:[%s849 + $0x4] sm:$0xf]
        %v946 = vld [vmem:[%s849 + $0x8] sm:$0xf]
        %v947 = vld [vmem:[%s849 + $0xc] sm:$0xf]
        %v948 = vld [vmem:[%s849 + $0x10] sm:$0xf]
        %v949 = vld [vmem:[%s849 + $0x14] sm:$0xf]
        %v950 = vld [vmem:[%s852] sm:$0x1]
        %v952 = vlaneseq
        %v953 = vshrl.u32 %v952, 7
        %v954 = vsub.s32 0, %v953
        %v955 = vrot.slane %v950, %v954
        %v959 = vunpack.c.l.b16 %v942
        %v960 = vunpack.c.l.b16 %v943
        %v961 = vpack.c.b16 %v960, %v959
        %v968 = vunpack.c.l.b16 %v944
        %v969 = vunpack.c.l.b16 %v945
        %v970 = vunpack.c.l.b16 %v946
        %v971 = vunpack.c.l.b16 %v947
        %v972 = vunpack.c.l.b16 %v948
        %v973 = vunpack.c.l.b16 %v949
        %v974 = vpack.c.b16 %v969, %v968
        %v975 = vpack.c.b16 %v971, %v970
        %v976 = vpack.c.b16 %v973, %v972
        %vm980 = vcmask 392192
        %v982 = vsel %vm980, %v961, 0
        %984 = vmatprep.subr.bf16.mxu0 0
        %985 = vmatpush1.bf16.msra.mxu0 %v974
        %986 = vmatprep.subr.bf16.mxu0 0
        %987 = vmatpush1.bf16.msra.mxu0 %v975
        %988 = vmatprep.subr.bf16.mxu0 0
        %989 = vmatpush1.bf16.msra.mxu0 %v976
        %990 = vmatprep.subr.bf16.mxu0 0
        %991 = vmatpush1.bf16.msra.mxu0 0
        %992 = vmatprep.subr.bf16.mxu0 0
        %993 = vmatpush1.bf16.msra.mxu0 0
        %994 = vmatprep.subr.bf16.mxu0 0
        %995 = vmatpush1.bf16.msra.mxu0 0
        %996 = vmatprep.subr.bf16.mxu0 0
        %997 = vmatpush1.bf16.msra.mxu0 0
        %998 = vmatprep.subr.bf16.mxu0 0
        %999 = vmatpush1.bf16.msra.mxu0 0
        %1000 = vmatprep.subr.bf16.mxu0 0
        %1001 = vmatpush1.bf16.msra.mxu0 0
        %1002 = vmatprep.subr.bf16.mxu0 0
        %1003 = vmatpush1.bf16.msra.mxu0 0
        %1004 = vmatprep.subr.bf16.mxu0 0
        %1005 = vmatpush1.bf16.msra.mxu0 0
        %1006 = vmatprep.subr.bf16.mxu0 0
        %1007 = vmatpush1.bf16.msra.mxu0 0
        %1008 = vmatprep.subr.bf16.mxu0 0
        %1009 = vmatpush1.bf16.msra.mxu0 0
        %1010 = vmatprep.subr.bf16.mxu0 0
        %1011 = vmatpush1.bf16.msra.mxu0 0
        %1012 = vmatprep.subr.bf16.mxu0 0
        %1013 = vmatpush1.bf16.msra.mxu0 0
        %1014 = vmatprep.subr.bf16.mxu0 0
        %1015 = vmatpush1.bf16.msra.mxu0 0
        %1016 = vmatprep.mubr.bf16.mxu0 0
        %1017 = vmatmul.mubr.bf16.gmra.mrb[0].mxu0 %v982
        %v1018 = vpop.f32.mrb[0].mxu0
        %v1019 = vadd.f32 %v955, %v1018
        %v1020 = vpop.f32.mrb[0].mxu0
        %v1021 = vpop.f32.mrb[0].mxu0
        %v1022 = vadd.f32 %v955, %v1021
        %v1023 = vpop.f32.mrb[0].mxu0
        %1024 = vdwg.mxu0
        %v1025 = vpack.c.bf16 %v937, %v937
        %v1026 = vpack.c.bf16 %v1022, %v1019
        %v1027 = vld [vmem:[%s841] sm:$0xff]
        %v1028 = vld [vmem:[%s700] sm:$0xf]
        %v1029 = vld [vmem:[%s844] sm:$0x1]
        %1031 = vset.pattern.permute.xlu0 0
        %1032 = vperm.xlu0 %1031, %v1027
        %v1033 = vpop.permute.xlu0 %1032
        %v1035 = vlaneseq
        %v1036 = vshrl.u32 %v1035, 7
        %v1037 = vsub.s32 0, %v1036
        %v1038 = vrot.slane %v1028, %v1037
        %v1039 = vmul.f32 %v1033, %v1038
        %v1041 = vlaneseq
        %v1042 = vshrl.u32 %v1041, 7
        %v1043 = vsub.s32 0, %v1042
        %v1044 = vrot.slane %v1029, %v1043
        %v1046 = vadd.f32 %v1039, %v1044
        %vm1047 = vcmask 64512
        %v1049 = vsel %vm1047, %v1025, 0
        %v1052 = vsel %vm1047, %v1026, 0
        %1054 = vmatprep.subr.bf16.mxu0 0
        %1055 = vmatpush1.bf16.xpose.msra.mxu0 %v1052
        %1056 = vmatprep.subr.bf16.mxu0 0
        %1057 = vmatpush1.bf16.xpose.msra.mxu0 0
        %1058 = vmatprep.subr.bf16.mxu0 0
        %1059 = vmatpush1.bf16.xpose.msra.mxu0 0
        %1060 = vmatprep.subr.bf16.mxu0 0
        %1061 = vmatpush1.bf16.xpose.msra.mxu0 0
        %1062 = vmatprep.subr.bf16.mxu0 0
        %1063 = vmatpush1.bf16.xpose.msra.mxu0 0
        %1064 = vmatprep.subr.bf16.mxu0 0
        %1065 = vmatpush1.bf16.xpose.msra.mxu0 0
        %1066 = vmatprep.subr.bf16.mxu0 0
        %1067 = vmatpush1.bf16.xpose.msra.mxu0 0
        %1068 = vmatprep.subr.bf16.mxu0 0
        %1069 = vmatpush1.bf16.xpose.msra.mxu0 0
        %1070 = vmatprep.subr.bf16.mxu0 0
        %1071 = vmatpush1.bf16.xpose.msra.mxu0 0
        %1072 = vmatprep.subr.bf16.mxu0 0
        %1073 = vmatpush1.bf16.xpose.msra.mxu0 0
        %1074 = vmatprep.subr.bf16.mxu0 0
        %1075 = vmatpush1.bf16.xpose.msra.mxu0 0
        %1076 = vmatprep.subr.bf16.mxu0 0
        %1077 = vmatpush1.bf16.xpose.msra.mxu0 0
        %1078 = vmatprep.subr.bf16.mxu0 0
        %1079 = vmatpush1.bf16.xpose.msra.mxu0 0
        %1080 = vmatprep.subr.bf16.mxu0 0
        %1081 = vmatpush1.bf16.xpose.msra.mxu0 0
        %1082 = vmatprep.subr.bf16.mxu0 0
        %1083 = vmatpush1.bf16.xpose.msra.mxu0 0
        %1084 = vmatprep.subr.bf16.mxu0 0
        %1085 = vmatpush1.bf16.xpose.msra.mxu0 0
        %1086 = vmatprep.mubr.bf16.mxu0 0
        %1087 = vmatmul.mubr.bf16.gmra.mrb[0].mxu0 %v1049
        %v1088 = vpop.f32.mrb[0].mxu0
        %v1089 = vadd.f32 %v1046, %v1088
        %v1090 = vpop.f32.mrb[0].mxu0
        %v1091 = vpop.f32.mrb[0].mxu0
        %v1092 = vpop.f32.mrb[0].mxu0
        %1093 = vdwg.mxu0
        %vm1094 = vcmask 130048
        %v1095 = vsel %vm1094, %v1089, -inf
        %1096 = vmax.xlane.f32.xlu0 %v1095
        %v1097 = vpop.xlane.xlu0 %1096
        %v1098 = vsub.f32 %v1089, %v1097
        %v1099 = vmul.f32 %v1098, 1.442695
        %v1100 = vpow.pop %v1099
        %v1101 = vsel %vm1094, %v1100, 0.0
        %1102 = vadd.xlane.f32.xlu0 %v1101
        %v1103 = vpop.xlane.xlu0 %1102
        %v1104 = vpack.c.bf16 %v1100, %v1100
        %1106 = vrot.lane.b32.xlu0 %v1026, 96
        %v1107 = vpop.permute.xlu0 %1106
        %v1110 = vsel %vm1094, %v1104, 0
        %1112 = vmatprep.subr.bf16.mxu0 0
        %1113 = vmatpush1.bf16.msra.mxu0 %v1107
        %1114 = vmatprep.subr.bf16.mxu0 0
        %1115 = vmatpush1.bf16.msra.mxu0 0
        %1116 = vmatprep.subr.bf16.mxu0 0
        %1117 = vmatpush1.bf16.msra.mxu0 0
        %1118 = vmatprep.subr.bf16.mxu0 0
        %1119 = vmatpush1.bf16.msra.mxu0 0
        %1120 = vmatprep.subr.bf16.mxu0 0
        %1121 = vmatpush1.bf16.msra.mxu0 0
        %1122 = vmatprep.subr.bf16.mxu0 0
        %1123 = vmatpush1.bf16.msra.mxu0 0
        %1124 = vmatprep.subr.bf16.mxu0 0
        %1125 = vmatpush1.bf16.msra.mxu0 0
        %1126 = vmatprep.subr.bf16.mxu0 0
        %1127 = vmatpush1.bf16.msra.mxu0 0
        %1128 = vmatprep.subr.bf16.mxu0 0
        %1129 = vmatpush1.bf16.msra.mxu0 0
        %1130 = vmatprep.subr.bf16.mxu0 0
        %1131 = vmatpush1.bf16.msra.mxu0 0
        %1132 = vmatprep.subr.bf16.mxu0 0
        %1133 = vmatpush1.bf16.msra.mxu0 0
        %1134 = vmatprep.subr.bf16.mxu0 0
        %1135 = vmatpush1.bf16.msra.mxu0 0
        %1136 = vmatprep.subr.bf16.mxu0 0
        %1137 = vmatpush1.bf16.msra.mxu0 0
        %1138 = vmatprep.subr.bf16.mxu0 0
        %1139 = vmatpush1.bf16.msra.mxu0 0
        %1140 = vmatprep.subr.bf16.mxu0 0
        %1141 = vmatpush1.bf16.msra.mxu0 0
        %1142 = vmatprep.subr.bf16.mxu0 0
        %1143 = vmatpush1.bf16.msra.mxu0 0
        %1144 = vmatprep.mubr.bf16.mxu0 0
        %1145 = vmatmul.mubr.bf16.gmra.mrb[0].mxu0 %v1110
        %v1146 = vpop.f32.mrb[0].mxu0
        %v1147 = vadd.f32 0.0, %v1146
        %v1148 = vpop.f32.mrb[0].mxu0
        %v1149 = vpop.f32.mrb[0].mxu0
        %v1150 = vpop.f32.mrb[0].mxu0
        %1151 = vdwg.mxu0
        %v1152 = vrcp.pop %v1103
        %v1153 = vmul.f32 %v1147, %v1152
        %v1154 = vpack.c.bf16 %v1153, %v1153
        %1155 = vset.pattern.permute.xlu0 1
        %1156 = vperm.xlu0 %1155, %v1027
        %v1157 = vpop.permute.xlu0 %1156
        %v1159 = vlaneseq
        %v1160 = vshrl.u32 %v1159, 7
        %v1161 = vsub.s32 1, %v1160
        %v1162 = vrot.slane %v1028, %v1161
        %v1163 = vmul.f32 %v1157, %v1162
        %v1164 = vadd.f32 %v1163, %v1044
        %1166 = vrot.lane.b32.xlu0 %v1025, 120
        %v1167 = vpop.permute.xlu0 %1166
        %1168 = vrot.lane.b32.xlu0 %v1026, 120
        %v1169 = vpop.permute.xlu0 %1168
        %v1171 = vsel %vm1047, %v1167, 0
        %v1174 = vsel %vm1047, %v1169, 0
        %1176 = vmatprep.subr.bf16.mxu0 0
        %1177 = vmatpush1.bf16.xpose.msra.mxu0 %v1174
        %1178 = vmatprep.subr.bf16.mxu0 0
        %1179 = vmatpush1.bf16.xpose.msra.mxu0 0
        %1180 = vmatprep.subr.bf16.mxu0 0
        %1181 = vmatpush1.bf16.xpose.msra.mxu0 0
        %1182 = vmatprep.subr.bf16.mxu0 0
        %1183 = vmatpush1.bf16.xpose.msra.mxu0 0
        %1184 = vmatprep.subr.bf16.mxu0 0
        %1185 = vmatpush1.bf16.xpose.msra.mxu0 0
        %1186 = vmatprep.subr.bf16.mxu0 0
        %1187 = vmatpush1.bf16.xpose.msra.mxu0 0
        %1188 = vmatprep.subr.bf16.mxu0 0
        %1189 = vmatpush1.bf16.xpose.msra.mxu0 0
        %1190 = vmatprep.subr.bf16.mxu0 0
        %1191 = vmatpush1.bf16.xpose.msra.mxu0 0
        %1192 = vmatprep.subr.bf16.mxu0 0
        %1193 = vmatpush1.bf16.xpose.msra.mxu0 0
        %1194 = vmatprep.subr.bf16.mxu0 0
        %1195 = vmatpush1.bf16.xpose.msra.mxu0 0
        %1196 = vmatprep.subr.bf16.mxu0 0
        %1197 = vmatpush1.bf16.xpose.msra.mxu0 0
        %1198 = vmatprep.subr.bf16.mxu0 0
        %1199 = vmatpush1.bf16.xpose.msra.mxu0 0
        %1200 = vmatprep.subr.bf16.mxu0 0
        %1201 = vmatpush1.bf16.xpose.msra.mxu0 0
        %1202 = vmatprep.subr.bf16.mxu0 0
        %1203 = vmatpush1.bf16.xpose.msra.mxu0 0
        %1204 = vmatprep.subr.bf16.mxu0 0
        %1205 = vmatpush1.bf16.xpose.msra.mxu0 0
        %1206 = vmatprep.subr.bf16.mxu0 0
        %1207 = vmatpush1.bf16.xpose.msra.mxu0 0
        %1208 = vmatprep.mubr.bf16.mxu0 0
        %1209 = vmatmul.mubr.bf16.gmra.mrb[0].mxu0 %v1171
        %v1210 = vpop.f32.mrb[0].mxu0
        %v1211 = vadd.f32 %v1164, %v1210
        %v1212 = vpop.f32.mrb[0].mxu0
        %v1213 = vpop.f32.mrb[0].mxu0
        %v1214 = vpop.f32.mrb[0].mxu0
        %1215 = vdwg.mxu0
        %v1216 = vsel %vm1094, %v1211, -inf
        %1217 = vmax.xlane.f32.xlu0 %v1216
        %v1218 = vpop.xlane.xlu0 %1217
        %v1219 = vsub.f32 %v1211, %v1218
        %v1220 = vmul.f32 %v1219, 1.442695
        %v1221 = vpow.pop %v1220
        %v1222 = vsel %vm1094, %v1221, 0.0
        %1223 = vadd.xlane.f32.xlu0 %v1222
        %v1224 = vpop.xlane.xlu0 %1223
        %v1225 = vpack.c.bf16 %v1221, %v1221
        %1226 = vrot.lane.b32.xlu0 %v1026, 88
        %v1227 = vpop.permute.xlu0 %1226
        %v1230 = vsel %vm1094, %v1225, 0
        %1232 = vmatprep.subr.bf16.mxu0 0
        %1233 = vmatpush1.bf16.msra.mxu0 %v1227
        %1234 = vmatprep.subr.bf16.mxu0 0
        %1235 = vmatpush1.bf16.msra.mxu0 0
        %1236 = vmatprep.subr.bf16.mxu0 0
        %1237 = vmatpush1.bf16.msra.mxu0 0
        %1238 = vmatprep.subr.bf16.mxu0 0
        %1239 = vmatpush1.bf16.msra.mxu0 0
        %1240 = vmatprep.subr.bf16.mxu0 0
        %1241 = vmatpush1.bf16.msra.mxu0 0
        %1242 = vmatprep.subr.bf16.mxu0 0
        %1243 = vmatpush1.bf16.msra.mxu0 0
        %1244 = vmatprep.subr.bf16.mxu0 0
        %1245 = vmatpush1.bf16.msra.mxu0 0
        %1246 = vmatprep.subr.bf16.mxu0 0
        %1247 = vmatpush1.bf16.msra.mxu0 0
        %1248 = vmatprep.subr.bf16.mxu0 0
        %1249 = vmatpush1.bf16.msra.mxu0 0
        %1250 = vmatprep.subr.bf16.mxu0 0
        %1251 = vmatpush1.bf16.msra.mxu0 0
        %1252 = vmatprep.subr.bf16.mxu0 0
        %1253 = vmatpush1.bf16.msra.mxu0 0
        %1254 = vmatprep.subr.bf16.mxu0 0
        %1255 = vmatpush1.bf16.msra.mxu0 0
        %1256 = vmatprep.subr.bf16.mxu0 0
        %1257 = vmatpush1.bf16.msra.mxu0 0
        %1258 = vmatprep.subr.bf16.mxu0 0
        %1259 = vmatpush1.bf16.msra.mxu0 0
        %1260 = vmatprep.subr.bf16.mxu0 0
        %1261 = vmatpush1.bf16.msra.mxu0 0
        %1262 = vmatprep.subr.bf16.mxu0 0
        %1263 = vmatpush1.bf16.msra.mxu0 0
        %1264 = vmatprep.mubr.bf16.mxu0 0
        %1265 = vmatmul.mubr.bf16.gmra.mrb[0].mxu0 %v1230
        %v1266 = vpop.f32.mrb[0].mxu0
        %v1267 = vadd.f32 0.0, %v1266
        %v1268 = vpop.f32.mrb[0].mxu0
        %v1269 = vpop.f32.mrb[0].mxu0
        %v1270 = vpop.f32.mrb[0].mxu0
        %1271 = vdwg.mxu0
        %v1272 = vrcp.pop %v1224
        %v1273 = vmul.f32 %v1267, %v1272
        %v1274 = vpack.c.bf16 %v1273, %v1273
        %1275 = vset.pattern.permute.xlu0 2
        %1276 = vperm.xlu0 %1275, %v1027
        %v1277 = vpop.permute.xlu0 %1276
        %v1279 = vlaneseq
        %v1280 = vshrl.u32 %v1279, 7
        %v1281 = vsub.s32 2, %v1280
        %v1282 = vrot.slane %v1028, %v1281
        %v1283 = vmul.f32 %v1277, %v1282
        %v1284 = vadd.f32 %v1283, %v1044
        %1285 = vrot.lane.b32.xlu0 %v1025, 112
        %v1286 = vpop.permute.xlu0 %1285
        %1287 = vrot.lane.b32.xlu0 %v1026, 112
        %v1288 = vpop.permute.xlu0 %1287
        %v1290 = vsel %vm1047, %v1286, 0
        %v1293 = vsel %vm1047, %v1288, 0
        %1295 = vmatprep.subr.bf16.mxu0 0
        %1296 = vmatpush1.bf16.xpose.msra.mxu0 %v1293
        %1297 = vmatprep.subr.bf16.mxu0 0
        %1298 = vmatpush1.bf16.xpose.msra.mxu0 0
        %1299 = vmatprep.subr.bf16.mxu0 0
        %1300 = vmatpush1.bf16.xpose.msra.mxu0 0
        %1301 = vmatprep.subr.bf16.mxu0 0
        %1302 = vmatpush1.bf16.xpose.msra.mxu0 0
        %1303 = vmatprep.subr.bf16.mxu0 0
        %1304 = vmatpush1.bf16.xpose.msra.mxu0 0
        %1305 = vmatprep.subr.bf16.mxu0 0
        %1306 = vmatpush1.bf16.xpose.msra.mxu0 0
        %1307 = vmatprep.subr.bf16.mxu0 0
        %1308 = vmatpush1.bf16.xpose.msra.mxu0 0
        %1309 = vmatprep.subr.bf16.mxu0 0
        %1310 = vmatpush1.bf16.xpose.msra.mxu0 0
        %1311 = vmatprep.subr.bf16.mxu0 0
        %1312 = vmatpush1.bf16.xpose.msra.mxu0 0
        %1313 = vmatprep.subr.bf16.mxu0 0
        %1314 = vmatpush1.bf16.xpose.msra.mxu0 0
        %1315 = vmatprep.subr.bf16.mxu0 0
        %1316 = vmatpush1.bf16.xpose.msra.mxu0 0
        %1317 = vmatprep.subr.bf16.mxu0 0
        %1318 = vmatpush1.bf16.xpose.msra.mxu0 0
        %1319 = vmatprep.subr.bf16.mxu0 0
        %1320 = vmatpush1.bf16.xpose.msra.mxu0 0
        %1321 = vmatprep.subr.bf16.mxu0 0
        %1322 = vmatpush1.bf16.xpose.msra.mxu0 0
        %1323 = vmatprep.subr.bf16.mxu0 0
        %1324 = vmatpush1.bf16.xpose.msra.mxu0 0
        %1325 = vmatprep.subr.bf16.mxu0 0
        %1326 = vmatpush1.bf16.xpose.msra.mxu0 0
        %1327 = vmatprep.mubr.bf16.mxu0 0
        %1328 = vmatmul.mubr.bf16.gmra.mrb[0].mxu0 %v1290
        %v1329 = vpop.f32.mrb[0].mxu0
        %v1330 = vadd.f32 %v1284, %v1329
        %v1331 = vpop.f32.mrb[0].mxu0
        %v1332 = vpop.f32.mrb[0].mxu0
        %v1333 = vpop.f32.mrb[0].mxu0
        %1334 = vdwg.mxu0
        %v1335 = vsel %vm1094, %v1330, -inf
        %1336 = vmax.xlane.f32.xlu0 %v1335
        %v1337 = vpop.xlane.xlu0 %1336
        %v1338 = vsub.f32 %v1330, %v1337
        %v1339 = vmul.f32 %v1338, 1.442695
        %v1340 = vpow.pop %v1339
        %v1341 = vsel %vm1094, %v1340, 0.0
        %1342 = vadd.xlane.f32.xlu0 %v1341
        %v1343 = vpop.xlane.xlu0 %1342
        %v1344 = vpack.c.bf16 %v1340, %v1340
        %1345 = vrot.lane.b32.xlu0 %v1026, 80
        %v1346 = vpop.permute.xlu0 %1345
        %v1349 = vsel %vm1094, %v1344, 0
        %1351 = vmatprep.subr.bf16.mxu0 0
        %1352 = vmatpush1.bf16.msra.mxu0 %v1346
        %1353 = vmatprep.subr.bf16.mxu0 0
        %1354 = vmatpush1.bf16.msra.mxu0 0
        %1355 = vmatprep.subr.bf16.mxu0 0
        %1356 = vmatpush1.bf16.msra.mxu0 0
        %1357 = vmatprep.subr.bf16.mxu0 0
        %1358 = vmatpush1.bf16.msra.mxu0 0
        %1359 = vmatprep.subr.bf16.mxu0 0
        %1360 = vmatpush1.bf16.msra.mxu0 0
        %1361 = vmatprep.subr.bf16.mxu0 0
        %1362 = vmatpush1.bf16.msra.mxu0 0
        %1363 = vmatprep.subr.bf16.mxu0 0
        %1364 = vmatpush1.bf16.msra.mxu0 0
        %1365 = vmatprep.subr.bf16.mxu0 0
        %1366 = vmatpush1.bf16.msra.mxu0 0
        %1367 = vmatprep.subr.bf16.mxu0 0
        %1368 = vmatpush1.bf16.msra.mxu0 0
        %1369 = vmatprep.subr.bf16.mxu0 0
        %1370 = vmatpush1.bf16.msra.mxu0 0
        %1371 = vmatprep.subr.bf16.mxu0 0
        %1372 = vmatpush1.bf16.msra.mxu0 0
        %1373 = vmatprep.subr.bf16.mxu0 0
        %1374 = vmatpush1.bf16.msra.mxu0 0
        %1375 = vmatprep.subr.bf16.mxu0 0
        %1376 = vmatpush1.bf16.msra.mxu0 0
        %1377 = vmatprep.subr.bf16.mxu0 0
        %1378 = vmatpush1.bf16.msra.mxu0 0
        %1379 = vmatprep.subr.bf16.mxu0 0
        %1380 = vmatpush1.bf16.msra.mxu0 0
        %1381 = vmatprep.subr.bf16.mxu0 0
        %1382 = vmatpush1.bf16.msra.mxu0 0
        %1383 = vmatprep.mubr.bf16.mxu0 0
        %1384 = vmatmul.mubr.bf16.gmra.mrb[0].mxu0 %v1349
        %v1385 = vpop.f32.mrb[0].mxu0
        %v1386 = vadd.f32 0.0, %v1385
        %v1387 = vpop.f32.mrb[0].mxu0
        %v1388 = vpop.f32.mrb[0].mxu0
        %v1389 = vpop.f32.mrb[0].mxu0
        %1390 = vdwg.mxu0
        %v1391 = vrcp.pop %v1343
        %v1392 = vmul.f32 %v1386, %v1391
        %v1393 = vpack.c.bf16 %v1392, %v1392
        %1394 = vset.pattern.permute.xlu0 3
        %1395 = vperm.xlu0 %1394, %v1027
        %v1396 = vpop.permute.xlu0 %1395
        %v1398 = vlaneseq
        %v1399 = vshrl.u32 %v1398, 7
        %v1400 = vsub.s32 3, %v1399
        %v1401 = vrot.slane %v1028, %v1400
        %v1402 = vmul.f32 %v1396, %v1401
        %v1403 = vadd.f32 %v1402, %v1044
        %1404 = vrot.lane.b32.xlu0 %v1025, 104
        %v1405 = vpop.permute.xlu0 %1404
        %1406 = vrot.lane.b32.xlu0 %v1026, 104
        %v1407 = vpop.permute.xlu0 %1406
        %v1409 = vsel %vm1047, %v1405, 0
        %v1412 = vsel %vm1047, %v1407, 0
        %1414 = vmatprep.subr.bf16.mxu0 0
        %1415 = vmatpush1.bf16.xpose.msra.mxu0 %v1412
        %1416 = vmatprep.subr.bf16.mxu0 0
        %1417 = vmatpush1.bf16.xpose.msra.mxu0 0
        %1418 = vmatprep.subr.bf16.mxu0 0
        %1419 = vmatpush1.bf16.xpose.msra.mxu0 0
        %1420 = vmatprep.subr.bf16.mxu0 0
        %1421 = vmatpush1.bf16.xpose.msra.mxu0 0
        %1422 = vmatprep.subr.bf16.mxu0 0
        %1423 = vmatpush1.bf16.xpose.msra.mxu0 0
        %1424 = vmatprep.subr.bf16.mxu0 0
        %1425 = vmatpush1.bf16.xpose.msra.mxu0 0
        %1426 = vmatprep.subr.bf16.mxu0 0
        %1427 = vmatpush1.bf16.xpose.msra.mxu0 0
        %1428 = vmatprep.subr.bf16.mxu0 0
        %1429 = vmatpush1.bf16.xpose.msra.mxu0 0
        %1430 = vmatprep.subr.bf16.mxu0 0
        %1431 = vmatpush1.bf16.xpose.msra.mxu0 0
        %1432 = vmatprep.subr.bf16.mxu0 0
        %1433 = vmatpush1.bf16.xpose.msra.mxu0 0
        %1434 = vmatprep.subr.bf16.mxu0 0
        %1435 = vmatpush1.bf16.xpose.msra.mxu0 0
        %1436 = vmatprep.subr.bf16.mxu0 0
        %1437 = vmatpush1.bf16.xpose.msra.mxu0 0
        %1438 = vmatprep.subr.bf16.mxu0 0
        %1439 = vmatpush1.bf16.xpose.msra.mxu0 0
        %1440 = vmatprep.subr.bf16.mxu0 0
        %1441 = vmatpush1.bf16.xpose.msra.mxu0 0
        %1442 = vmatprep.subr.bf16.mxu0 0
        %1443 = vmatpush1.bf16.xpose.msra.mxu0 0
        %1444 = vmatprep.subr.bf16.mxu0 0
        %1445 = vmatpush1.bf16.xpose.msra.mxu0 0
        %1446 = vmatprep.mubr.bf16.mxu0 0
        %1447 = vmatmul.mubr.bf16.gmra.mrb[0].mxu0 %v1409
        %v1448 = vpop.f32.mrb[0].mxu0
        %v1449 = vadd.f32 %v1403, %v1448
        %v1450 = vpop.f32.mrb[0].mxu0
        %v1451 = vpop.f32.mrb[0].mxu0
        %v1452 = vpop.f32.mrb[0].mxu0
        %1453 = vdwg.mxu0
        %v1454 = vsel %vm1094, %v1449, -inf
        %1455 = vmax.xlane.f32.xlu0 %v1454
        %v1456 = vpop.xlane.xlu0 %1455
        %v1457 = vsub.f32 %v1449, %v1456
        %v1458 = vmul.f32 %v1457, 1.442695
        %v1459 = vpow.pop %v1458
        %v1460 = vsel %vm1094, %v1459, 0.0
        %1461 = vadd.xlane.f32.xlu0 %v1460
        %v1462 = vpop.xlane.xlu0 %1461
        %v1463 = vpack.c.bf16 %v1459, %v1459
        %1464 = vrot.lane.b32.xlu0 %v1026, 72
        %v1465 = vpop.permute.xlu0 %1464
        %v1468 = vsel %vm1094, %v1463, 0
        %1470 = vmatprep.subr.bf16.mxu0 0
        %1471 = vmatpush1.bf16.msra.mxu0 %v1465
        %1472 = vmatprep.subr.bf16.mxu0 0
        %1473 = vmatpush1.bf16.msra.mxu0 0
        %1474 = vmatprep.subr.bf16.mxu0 0
        %1475 = vmatpush1.bf16.msra.mxu0 0
        %1476 = vmatprep.subr.bf16.mxu0 0
        %1477 = vmatpush1.bf16.msra.mxu0 0
        %1478 = vmatprep.subr.bf16.mxu0 0
        %1479 = vmatpush1.bf16.msra.mxu0 0
        %1480 = vmatprep.subr.bf16.mxu0 0
        %1481 = vmatpush1.bf16.msra.mxu0 0
        %1482 = vmatprep.subr.bf16.mxu0 0
        %1483 = vmatpush1.bf16.msra.mxu0 0
        %1484 = vmatprep.subr.bf16.mxu0 0
        %1485 = vmatpush1.bf16.msra.mxu0 0
        %1486 = vmatprep.subr.bf16.mxu0 0
        %1487 = vmatpush1.bf16.msra.mxu0 0
        %1488 = vmatprep.subr.bf16.mxu0 0
        %1489 = vmatpush1.bf16.msra.mxu0 0
        %1490 = vmatprep.subr.bf16.mxu0 0
        %1491 = vmatpush1.bf16.msra.mxu0 0
        %1492 = vmatprep.subr.bf16.mxu0 0
        %1493 = vmatpush1.bf16.msra.mxu0 0
        %1494 = vmatprep.subr.bf16.mxu0 0
        %1495 = vmatpush1.bf16.msra.mxu0 0
        %1496 = vmatprep.subr.bf16.mxu0 0
        %1497 = vmatpush1.bf16.msra.mxu0 0
        %1498 = vmatprep.subr.bf16.mxu0 0
        %1499 = vmatpush1.bf16.msra.mxu0 0
        %1500 = vmatprep.subr.bf16.mxu0 0
        %1501 = vmatpush1.bf16.msra.mxu0 0
        %1502 = vmatprep.mubr.bf16.mxu0 0
        %1503 = vmatmul.mubr.bf16.gmra.mrb[0].mxu0 %v1468
        %v1504 = vpop.f32.mrb[0].mxu0
        %v1505 = vadd.f32 0.0, %v1504
        %v1506 = vpop.f32.mrb[0].mxu0
        %v1507 = vpop.f32.mrb[0].mxu0
        %v1508 = vpop.f32.mrb[0].mxu0
        %1509 = vdwg.mxu0
        %v1510 = vrcp.pop %v1462
        %v1511 = vmul.f32 %v1505, %v1510
        %v1512 = vpack.c.bf16 %v1511, %v1511
        %1514 = vrot.lane.b32.xlu0 %v1274, 8
        %v1515 = vpop.permute.xlu0 %1514
        %1517 = vrot.lane.b32.xlu0 %v1393, 16
        %v1518 = vpop.permute.xlu0 %1517
        %1520 = vrot.lane.b32.xlu0 %v1512, 24
        %v1521 = vpop.permute.xlu0 %1520
        %v1524 = vsel %vm1047, %v1154, %v1515
        %v1526 = vsel %vm1094, %v1524, %v1518
        %vm1527 = vcmask 195584
        %v1529 = vsel %vm1527, %v1526, %v1521
        %v1530 = vld [vmem:[%s726] sm:$0xf]
        %v1531 = vld [vmem:[%s726 + $0x4] sm:$0xf]
        %v1532 = vld [vmem:[%s726 + $0x8] sm:$0xf]
        %v1533 = vld [vmem:[%s726 + $0xc] sm:$0xf]
        %v1534 = vld [vmem:[%s855] sm:$0x1]
        %v1536 = vlaneseq
        %v1537 = vshrl.u32 %v1536, 7
        %v1538 = vsub.s32 0, %v1537
        %v1539 = vrot.slane %v1534, %v1538
        %v1545 = vunpack.c.l.b16 %v1530
        %v1546 = vunpack.c.l.b16 %v1531
        %v1547 = vunpack.c.l.b16 %v1532
        %v1548 = vunpack.c.l.b16 %v1533
        %v1549 = vpack.c.b16 %v1546, %v1545
        %v1550 = vpack.c.b16 %v1548, %v1547
        %v1553 = vsel %vm898, %v1529, 0
        %1555 = vmatprep.subr.bf16.mxu0 0
        %1556 = vmatpush1.bf16.msra.mxu0 %v1549
        %1557 = vmatprep.subr.bf16.mxu0 0
        %1558 = vmatpush1.bf16.msra.mxu0 %v1550
        %1559 = vmatprep.subr.bf16.mxu0 0
        %1560 = vmatpush1.bf16.msra.mxu0 0
        %1561 = vmatprep.subr.bf16.mxu0 0
        %1562 = vmatpush1.bf16.msra.mxu0 0
        %1563 = vmatprep.subr.bf16.mxu0 0
        %1564 = vmatpush1.bf16.msra.mxu0 0
        %1565 = vmatprep.subr.bf16.mxu0 0
        %1566 = vmatpush1.bf16.msra.mxu0 0
        %1567 = vmatprep.subr.bf16.mxu0 0
        %1568 = vmatpush1.bf16.msra.mxu0 0
        %1569 = vmatprep.subr.bf16.mxu0 0
        %1570 = vmatpush1.bf16.msra.mxu0 0
        %1571 = vmatprep.subr.bf16.mxu0 0
        %1572 = vmatpush1.bf16.msra.mxu0 0
        %1573 = vmatprep.subr.bf16.mxu0 0
        %1574 = vmatpush1.bf16.msra.mxu0 0
        %1575 = vmatprep.subr.bf16.mxu0 0
        %1576 = vmatpush1.bf16.msra.mxu0 0
        %1577 = vmatprep.subr.bf16.mxu0 0
        %1578 = vmatpush1.bf16.msra.mxu0 0
        %1579 = vmatprep.subr.bf16.mxu0 0
        %1580 = vmatpush1.bf16.msra.mxu0 0
        %1581 = vmatprep.subr.bf16.mxu0 0
        %1582 = vmatpush1.bf16.msra.mxu0 0
        %1583 = vmatprep.subr.bf16.mxu0 0
        %1584 = vmatpush1.bf16.msra.mxu0 0
        %1585 = vmatprep.subr.bf16.mxu0 0
        %1586 = vmatpush1.bf16.msra.mxu0 0
        %1587 = vmatprep.mubr.bf16.mxu0 0
        %1588 = vmatmul.mubr.bf16.gmra.mrb[0].mxu0 %v1553
        %v1589 = vpop.f32.mrb[0].mxu0
        %v1590 = vadd.f32 %v1539, %v1589
        %v1591 = vpop.f32.mrb[0].mxu0
        %v1592 = vpop.f32.mrb[0].mxu0
        %v1593 = vpop.f32.mrb[0].mxu0
        %1594 = vdwg.mxu0
        %v1595 = vadd.f32 %v873, %v1590
        %v1596 = vsel %vm898, %v1595, 0.0
        %1597 = vadd.xlane.f32.xlu0 %v1596
        %v1598 = vpop.xlane.xlu0 %1597
        %v1599 = vrcp.pop 32.0
        %v1600 = vmul.f32 %v1598, %v1599
        %v1601 = vsub.f32 %v1595, %v1600
        %v1602 = vmul.f32 %v1601, %v1601
        %v1603 = vsel %vm898, %v1602, 0.0
        %1604 = vadd.xlane.f32.xlu0 %v1603
        %v1605 = vpop.xlane.xlu0 %1604
        %v1606 = vmul.f32 %v1605, %v1599
        %v1607 = vadd.f32 %v1606, 1e-05
        %v1608 = vrsqrt.pop %v1607
        %v1609 = vmul.f32 %v1601, %v1608
        %v1610 = vld [vmem:[%s858] sm:$0x1]
        %v1612 = vlaneseq
        %v1613 = vshrl.u32 %v1612, 7
        %v1614 = vsub.s32 0, %v1613
        %v1615 = vrot.slane %v1610, %v1614
        %v1617 = vmul.f32 %v1609, %v1615
        %v1618 = vld [vmem:[%s861] sm:$0x1]
        %v1620 = vlaneseq
        %v1621 = vshrl.u32 %v1620, 7
        %v1622 = vsub.s32 0, %v1621
        %v1623 = vrot.slane %v1618, %v1622
        %v1625 = vadd.f32 %v1617, %v1623
        %v1626 = vpack.c.bf16 %v1625, %v1625
        %v1627 = vld [vmem:[%s735] sm:$0xf]
        %v1628 = vld [vmem:[%s735 + $0x4] sm:$0xf]
        %v1629 = vld [vmem:[%s735 + $0x8] sm:$0xf]
        %v1630 = vld [vmem:[%s735 + $0xc] sm:$0xf]
        %v1631 = vld [vmem:[%s864] sm:$0x1]
        %v1633 = vlaneseq
        %v1634 = vshrl.u32 %v1633, 7
        %v1635 = vsub.s32 0, %v1634
        %v1636 = vrot.slane %v1631, %v1635
        %v1642 = vunpack.c.l.b16 %v1627
        %v1643 = vunpack.c.l.b16 %v1628
        %v1644 = vunpack.c.l.b16 %v1629
        %v1645 = vunpack.c.l.b16 %v1630
        %v1646 = vpack.c.b16 %v1643, %v1642
        %v1647 = vpack.c.b16 %v1645, %v1644
        %v1651 = vsel %vm898, %v1626, 0
        %1653 = vmatprep.subr.bf16.mxu0 0
        %1654 = vmatpush1.bf16.msra.mxu0 %v1646
        %1655 = vmatprep.subr.bf16.mxu0 0
        %1656 = vmatpush1.bf16.msra.mxu0 %v1647
        %1657 = vmatprep.subr.bf16.mxu0 0
        %1658 = vmatpush1.bf16.msra.mxu0 0
        %1659 = vmatprep.subr.bf16.mxu0 0
        %1660 = vmatpush1.bf16.msra.mxu0 0
        %1661 = vmatprep.subr.bf16.mxu0 0
        %1662 = vmatpush1.bf16.msra.mxu0 0
        %1663 = vmatprep.subr.bf16.mxu0 0
        %1664 = vmatpush1.bf16.msra.mxu0 0
        %1665 = vmatprep.subr.bf16.mxu0 0
        %1666 = vmatpush1.bf16.msra.mxu0 0
        %1667 = vmatprep.subr.bf16.mxu0 0
        %1668 = vmatpush1.bf16.msra.mxu0 0
        %1669 = vmatprep.subr.bf16.mxu0 0
        %1670 = vmatpush1.bf16.msra.mxu0 0
        %1671 = vmatprep.subr.bf16.mxu0 0
        %1672 = vmatpush1.bf16.msra.mxu0 0
        %1673 = vmatprep.subr.bf16.mxu0 0
        %1674 = vmatpush1.bf16.msra.mxu0 0
        %1675 = vmatprep.subr.bf16.mxu0 0
        %1676 = vmatpush1.bf16.msra.mxu0 0
        %1677 = vmatprep.subr.bf16.mxu0 0
        %1678 = vmatpush1.bf16.msra.mxu0 0
        %1679 = vmatprep.subr.bf16.mxu0 0
        %1680 = vmatpush1.bf16.msra.mxu0 0
        %1681 = vmatprep.subr.bf16.mxu0 0
        %1682 = vmatpush1.bf16.msra.mxu0 0
        %1683 = vmatprep.subr.bf16.mxu0 0
        %1684 = vmatpush1.bf16.msra.mxu0 0
        %1685 = vmatprep.mubr.bf16.mxu0 0
        %1686 = vmatmul.mubr.bf16.gmra.mrb[0].mxu0 %v1651
        %v1687 = vpop.f32.mrb[0].mxu0
        %v1688 = vadd.f32 %v1636, %v1687
        %v1689 = vpop.f32.mrb[0].mxu0
        %v1690 = vpop.f32.mrb[0].mxu0
        %v1691 = vpop.f32.mrb[0].mxu0
        %1692 = vdwg.mxu0
        %v1693 = vadd.f32 %v1688, %v1595
        %1694 = vst.msk [vmem:[#allocation2] sm:$0xff] %vm898, %v1693
        %p1695 = scmp.eq.s32.totalorder %s46, 1
        // Predicated region
        $region113: #{tpu_custom_call.1} parent=79 // pred_check
          %p1696 = pneg %p1695
        $region114: #{tpu_custom_call.1} parent=79 // pred_check_branch
          %1698 = sbr.rel (%p1696) target = $region116
        $region115: #{tpu_custom_call.1} parent=79 // pred_region
          %1699 = vst.msk [vmem:[%s837] sm:$0xff] %vm898, %v1693
        $region116: #{tpu_custom_call.1} parent=79 // pred_fallthru
          _
        %s1700 = sand.u32 %s451, 1
        %s1701 = scalar_lea.sflag [#allocation5], %s1700
        %s1702 = sand.u32 %s451, 1
        %s1703 = smul.addr %s1702, 8
        %s1704 = scalar_lea.vmem [#allocation15], %s1703
        // Predicated region
        $region117: #{tpu_custom_call.1} parent=79 // pred_check
          %p1705 = pneg %p461
        $region118: #{tpu_custom_call.1} parent=79 // pred_check_branch
          %1707 = sbr.rel (%p1705) target = $region120
        $region119: #{tpu_custom_call.1} parent=79 // pred_region
          %s1709 = ssub.s32 128, 128
          %1710 = vsyncadd %s1701, %s1709
          %s1711 = smul.addr %s45, 128
          %s1712 = scalar_lea.hbm %s15, %s1711
          %s1714 = sshll.u32 %s1704, 4
          %s1715 = int_to_ptr.vmem [resolvable:$true] %s1714
          %1717 = dma.vmem_to_hbm [thread:$0]  %s1715, 128, %s1712, %s1701
        $region120: #{tpu_custom_call.1} parent=79 // pred_fallthru
          _
      $region80: #{tpu_custom_call.1} parent=5 // pred_fallthru
        _
      %p1718 = scmp.le.s32.totalorder 2, %s36
      // Predicated region
      $region121: #{tpu_custom_call.1} parent=5 // pred_check
        %p1719 = pneg %p1718
      $region122: #{tpu_custom_call.1} parent=5 // pred_check_branch
        %1721 = sbr.rel (%p1719) target = $region124
      $region123: #{tpu_custom_call.1} parent=5 // pred_region
        %s1722 = ssub.s32 %s36, 2
        // Predicated region
        $region125: #{tpu_custom_call.1} parent=123 // pred_check
          %p1723 = pneg %p467
        $region126: #{tpu_custom_call.1} parent=123 // pred_check_branch
          %1725 = sbr.rel (%p1723) target = $region128
        $region127: #{tpu_custom_call.1} parent=123 // pred_region
          %s1726 = sand.u32 %s452, 1
          %s1727 = scalar_lea.sflag [#allocation5], %s1726
          %s1728 = sand.u32 %s452, 1
          %s1729 = smul.addr %s1728, 8
          %s1730 = scalar_lea.vmem [#allocation15], %s1729
          %1731 = dma.done %s1727, 128
        $region128: #{tpu_custom_call.1} parent=123 // pred_fallthru
          _
      $region124: #{tpu_custom_call.1} parent=5 // pred_fallthru
        _
    $region6: #{tpu_custom_call.1} parent=1 // loop_footer
      %s40 = sadd.s32 1, %s36
    $region7: #{tpu_custom_call.1} parent=1 // loop_footer_branch
      %35 = sbr.rel target = $region3
    $region8: #{tpu_custom_call.1} parent=1 // loop_exit
      _
    %1732 = vsyncpa [#allocation4], 1
    %s1733 = scalar_lea.sflag [#allocation4], 1
    %1734 = vsyncpa %s1733, 1
    %1735 = vsyncpa [#allocation7], 1
    %s1736 = scalar_lea.sflag [#allocation7], 1
    %1737 = vsyncpa %s1736, 1
    %1738 = vsyncpa [#allocation10], 1
    %s1739 = scalar_lea.sflag [#allocation10], 1
    %1740 = vsyncpa %s1739, 1
    %1741 = vsyncpa [#allocation13], 1
    %s1742 = scalar_lea.sflag [#allocation13], 1
    %1743 = vsyncpa %s1742, 1
    %1744 = vsyncpa [#allocation5], 1
    %s1745 = scalar_lea.sflag [#allocation5], 1
    %1746 = vsyncpa %s1745, 1

</llo_original>
